<compile_context>
chip_gen: v6e
topology: v6e:2x2x1
jax: 0.10.0
libtpu: 0.0.40
codegen_flags: <defaults>
</compile_context>

<pallas_src>
import jax
import jax.numpy as jnp
from jax import lax
from jax.experimental import pallas as pl
from jax.experimental.pallas import tpu as pltpu


# ---------------------------------------------------------------------------
# Kernel
# ---------------------------------------------------------------------------
def _make_vicreg_kernel(n_batch, mm_dtype, emit_gram, multi_step):
    """Per-(partition, feature-tile) VICReg partial-accumulation kernel."""
    inv_nm1 = 1.0 / float(n_batch - 1)
    # Contract the feature (lane) axis of both operands: (N, d) x (N, d) -> (N, N)
    dnums = (((1,), (1,)), ((), ()))

    def _emit(scal_ref, gramp_ref, gramt_ref, mse, rp, rt, dp, dt, g_p, g_t):
        if emit_gram:
            # Multi-partition case: Gram partials from different partitions must
            # be summed *before* squaring, so emit them (combined in XLA).
            gramp_ref[...] = g_p
            gramt_ref[...] = g_t
            fro_p = jnp.float32(0.0)
            fro_t = jnp.float32(0.0)
        else:
            # Single-partition case: fold the Frobenius epilogue into the kernel
            # so only 8 scalars leave VMEM.
            fro_p = jnp.sum(g_p * g_p)
            fro_t = jnp.sum(g_t * g_t)
        scal_ref[0] = mse
        scal_ref[1] = rp
        scal_ref[2] = rt
        scal_ref[3] = dp
        scal_ref[4] = dt
        scal_ref[5] = fro_p
        scal_ref[6] = fro_t
        scal_ref[7] = jnp.float32(0.0)

    def kernel(*refs):
        if emit_gram:
            p_ref, t_ref, gramp_ref, gramt_ref, scal_ref = refs[:5]
            scratch = refs[5:]
        else:
            p_ref, t_ref, scal_ref = refs[:3]
            gramp_ref = gramt_ref = None
            scratch = refs[3:]

        p = p_ref[...].astype(jnp.float32)
        t = t_ref[...].astype(jnp.float32)

        # invariance partial: per-feature (lane) sums only — no cross-lane reduce
        diff = p - t
        mse_vec = jnp.sum(diff * diff, axis=0, keepdims=True)           # (1, d)

        # per-feature centering (every feature column is complete inside a tile)
        pc = p - jnp.mean(p, axis=0, keepdims=True)
        tc = t - jnp.mean(t, axis=0, keepdims=True)

        # per-feature sum of squares: shared by the variance term and diag(C)
        sq_p = jnp.sum(pc * pc, axis=0, keepdims=True)                  # (1, d)
        sq_t = jnp.sum(tc * tc, axis=0, keepdims=True)

        relu_p = jnp.maximum(1.0 - (sq_p * inv_nm1 + 1e-4), 0.0)
        relu_t = jnp.maximum(1.0 - (sq_t * inv_nm1 + 1e-4), 0.0)
        dsq_p = sq_p * sq_p
        dsq_t = sq_t * sq_t

        # Gram partials: two plain MXU matmuls over the lane axis, f32 accumulate
        # (no stack / batched einsum / extra VMEM copy).
        pm = pc.astype(mm_dtype)
        tm = tc.astype(mm_dtype)
        g_p = lax.dot_general(pm, pm, dnums, preferred_element_type=jnp.float32)
        g_t = lax.dot_general(tm, tm, dnums, preferred_element_type=jnp.float32)

        if not multi_step:
            # Single feature tile: no accumulators, no pl.when — write outputs now.
            _emit(scal_ref, gramp_ref, gramt_ref,
                  jnp.sum(mse_vec), jnp.sum(relu_p), jnp.sum(relu_t),
                  jnp.sum(dsq_p), jnp.sum(dsq_t), g_p, g_t)
            return

        (gp_acc, gt_acc, mse_acc, rp_acc, rt_acc, dp_acc, dt_acc) = scratch
        ti = pl.program_id(1)

        @pl.when(ti == 0)
        def _init():
            gp_acc[...] = jnp.zeros_like(gp_acc)
            gt_acc[...] = jnp.zeros_like(gt_acc)
            mse_acc[...] = jnp.zeros_like(mse_acc)
            rp_acc[...] = jnp.zeros_like(rp_acc)
            rt_acc[...] = jnp.zeros_like(rt_acc)
            dp_acc[...] = jnp.zeros_like(dp_acc)
            dt_acc[...] = jnp.zeros_like(dt_acc)

        # Accumulate lane vectors / Gram tiles in VMEM: the streaming inner loop
        # is VPU+MXU only (no XLU full-reduces, no SMEM scalar read-modify-write).
        gp_acc[...] += g_p
        gt_acc[...] += g_t
        mse_acc[...] += mse_vec
        rp_acc[...] += relu_p
        rt_acc[...] += relu_t
        dp_acc[...] += dsq_p
        dt_acc[...] += dsq_t

        @pl.when(ti == pl.num_programs(1) - 1)
        def _finalize():
            _emit(scal_ref, gramp_ref, gramt_ref,
                  jnp.sum(mse_acc[...]), jnp.sum(rp_acc[...]), jnp.sum(rt_acc[...]),
                  jnp.sum(dp_acc[...]), jnp.sum(dt_acc[...]),
                  gp_acc[...], gt_acc[...])

    return kernel


# ---------------------------------------------------------------------------
# Tile / partition selection (VMEM-budget aware)
# ---------------------------------------------------------------------------
def _vmem_bytes_per_step(n, d_tile, in_itemsize):
    inputs = 2 * 2 * n * d_tile * in_itemsize   # 2 arrays x double-buffered DMA
    work = 6 * n * d_tile * 4                   # f32 p/t/diff/pc/tc (+ slack)
    vecs = 16 * d_tile * 4                      # lane-vector accumulators
    gram = 4 * n * n * 4                        # Gram accumulators + matmul results
    return inputs + work + vecs + gram


_TILE_BUDGET_BYTES = 32 * 1024 * 1024  # fits default scoped VMEM on v6e / v7x


def _choose_d_tile(n, d, in_itemsize, budget=_TILE_BUDGET_BYTES):
    # Prefer the full feature width: single grid step, no accumulators at all.
    if _vmem_bytes_per_step(n, d, in_itemsize) <= budget:
        return d
    # Otherwise the largest lane-dense tile (multiple of 128 dividing D) that fits.
    for cand in (4096, 2048, 1024, 512, 256, 128):
        if cand < d and d % cand == 0 and _vmem_bytes_per_step(n, cand, in_itemsize) <= budget:
            return cand
    # TODO(synk): pathological shapes (huge N with D not a multiple of 128) may
    # exceed v7x's 64 MiB physical VMEM; would need an N-tiled formulation.
    return 128 if d % 128 == 0 else d


def _tensorcores_per_device():
    """Best-effort TensorCore count; a >1 'parallel' partition only pays on multi-TC chips."""
    try:
        dev = jax.devices()[0]
        for attr in ("num_cores", "core_count", "num_cores_per_chip"):
            v = getattr(dev, attr, None)
            if isinstance(v, int) and v > 0:
                return v
        if "v7" in str(getattr(dev, "device_kind", "")).lower():
            return 2
    except Exception:
        pass
    return 1


# ---------------------------------------------------------------------------
# Public wrapper
# ---------------------------------------------------------------------------
def vicreg_loss(pred_encs, target_encs,
                lambda_invariance=25.0, mu_variance=25.0, nu_covariance=1.0,
                *, d_tile=None, n_parts=None, gram_in_bf16=False):
    assert pred_encs.shape == target_encs.shape
    assert pred_encs.ndim == 2, "expected (N, D) encodings"
    N, D = pred_encs.shape
    assert N >= 2, "torch.var (unbiased) requires N >= 2"

    itemsize = jnp.dtype(pred_encs.dtype).itemsize
    if d_tile is None:
        d_tile = _choose_d_tile(N, D, itemsize)
    assert D % d_tile == 0, "d_tile must divide D"
    n_tiles = D // d_tile

    want_parts = _tensorcores_per_device() if n_parts is None else int(n_parts)
    # Multi-way partition only on multi-TC chips AND only with >= 2 tiles per
    # core so each core keeps a double-buffered input stream.
    if want_parts > 1 and n_tiles % want_parts == 0 and n_tiles // want_parts >= 2:
        n_parts_eff = want_parts
    else:
        n_parts_eff = 1
    tiles_per_part = n_tiles // n_parts_eff

    emit_gram = n_parts_eff > 1
    multi_step = tiles_per_part > 1

    # bf16 inputs keep bf16 MXU operands; optional bf16 Gram for f32 inputs.
    mm_dtype = jnp.bfloat16 if (pred_encs.dtype == jnp.bfloat16 or gram_in_bf16) else jnp.float32

    est = _vmem_bytes_per_step(N, d_tile, itemsize)
    # 48 MiB is above every default scoped limit and below v7x's 64 MiB physical VMEM.
    vmem_limit = max(48 * 1024 * 1024, min(int(1.5 * est) + (4 << 20), 100 * 1024 * 1024))

    in_map = lambda pi, ti: (0, pi * tiles_per_part + ti)
    in_specs = [pl.BlockSpec((N, d_tile), in_map),
                pl.BlockSpec((N, d_tile), in_map)]

    scal_shape = jax.ShapeDtypeStruct((n_parts_eff, 8), jnp.float32)
    scal_spec = pl.BlockSpec((None, 8), lambda pi, ti: (pi, 0),
                             memory_space=pltpu.MemorySpace.SMEM)

    if emit_gram:
        gram_shape = jax.ShapeDtypeStruct((n_parts_eff, N, N), jnp.float32)
        gram_spec = pl.BlockSpec((None, N, N), lambda pi, ti: (pi, 0, 0))
        out_shape = (gram_shape, gram_shape, scal_shape)
        out_specs = (gram_spec, gram_spec, scal_spec)
    else:
        out_shape = scal_shape
        out_specs = scal_spec

    scratch_shapes = []
    if multi_step:
        scratch_shapes = [
            pltpu.VMEM((N, N), jnp.float32),        # Gram accumulator (pred)
            pltpu.VMEM((N, N), jnp.float32),        # Gram accumulator (target)
            pltpu.VMEM((1, d_tile), jnp.float32),   # mse lane accumulator
            pltpu.VMEM((1, d_tile), jnp.float32),   # relu(pred) lane accumulator
            pltpu.VMEM((1, d_tile), jnp.float32),   # relu(target) lane accumulator
            pltpu.VMEM((1, d_tile), jnp.float32),   # diag^2(pred) lane accumulator
            pltpu.VMEM((1, d_tile), jnp.float32),   # diag^2(target) lane accumulator
        ]

    result = pl.pallas_call(
        _make_vicreg_kernel(N, mm_dtype, emit_gram, multi_step),
        grid=(n_parts_eff, tiles_per_part),
        in_specs=in_specs,
        out_specs=out_specs,
        out_shape=out_shape,
        scratch_shapes=scratch_shapes,
        compiler_params=pltpu.CompilerParams(
            dimension_semantics=("parallel", "arbitrary"),
            vmem_limit_bytes=vmem_limit),
    )(pred_encs, target_encs)

    # ---- tiny final combine in XLA ----
    if emit_gram:
        gram_p, gram_t, scal = result
        s = jnp.sum(scal, axis=0)
        g_p = jnp.sum(gram_p, axis=0)
        g_t = jnp.sum(gram_t, axis=0)
        fro_p = jnp.sum(g_p * g_p)
        fro_t = jnp.sum(g_t * g_t)
    else:
        scal = result
        s = scal[0]
        fro_p = s[5]
        fro_t = s[6]

    inv_nm1_sq = 1.0 / float((N - 1) ** 2)
    invariance_loss = s[0] / (N * D)
    variance_loss = (s[1] + s[2]) / D
    # strict upper triangle: sum_{i<j} C_ij^2 = (||C||_F^2 - sum_j C_jj^2) / 2
    covariance_loss = 0.5 * ((fro_p - s[3]) + (fro_t - s[4])) * inv_nm1_sq / D

    return (lambda_invariance * invariance_loss
            + mu_variance * variance_loss
            + nu_covariance * covariance_loss)


# ---------------------------------------------------------------------------
# Pure-JAX reference mirroring the PyTorch forward
# ---------------------------------------------------------------------------
def _reference(pred, target, lam=25.0, mu=25.0, nu=1.0):
    p = pred.astype(jnp.float32)
    t = target.astype(jnp.float32)
    N, D = p.shape
    inv = jnp.mean((p - t) ** 2)
    var_p = jnp.var(p, axis=0, ddof=1) + 1e-4
    var_t = jnp.var(t, axis=0, ddof=1) + 1e-4
    var_loss = jnp.mean(jax.nn.relu(1 - var_p)) + jnp.mean(jax.nn.relu(1 - var_t))
    pc = p - p.mean(axis=0)
    tc = t - t.mean(axis=0)
    cov_p = pc.T @ pc / (N - 1)
    cov_t = tc.T @ tc / (N - 1)
    triu = jnp.triu(jnp.ones((D, D), bool), k=1)
    cov_loss = (jnp.sum(jnp.where(triu, cov_p ** 2, 0.0))
                + jnp.sum(jnp.where(triu, cov_t ** 2, 0.0))) / D
    return lam * inv + mu * var_loss + nu * cov_loss


if __name__ == "__main__":
    key = jax.random.PRNGKey(0)
    k1, k2 = jax.random.split(key)
    # Small VICReg-style shapes: batch 16, D multiple of 128 (lane-dense tiles).
    N, D = 16, 2048
    pred_encs = jax.random.normal(k1, (N, D), dtype=jnp.float32)
    target_encs = jax.random.normal(k2, (N, D), dtype=jnp.float32)

    ref = jax.block_until_ready(_reference(pred_encs, target_encs))
    tol = dict(rtol=2e-3, atol=2e-3)   # covers TPU matmul-precision differences

    # 1) auto config: full-width tile -> single grid step, scalar-only output.
    loss = jax.block_until_ready(vicreg_loss(pred_encs, target_encs))
    assert jnp.allclose(loss, ref, **tol), ("auto", loss, ref)

    # 2) forced streaming config (4 feature tiles, single partition):
    #    exercises the VMEM lane-vector/Gram accumulators + folded epilogue.
    loss2 = jax.block_until_ready(
        vicreg_loss(pred_encs, target_encs, d_tile=512, n_parts=1))
    assert jnp.allclose(loss2, ref, **tol), ("stream", loss2, ref)

    # 3) forced dual-partition config (v7x-style dual-TensorCore layout):
    #    per-partition Gram outputs combined in XLA.
    loss3 = jax.block_until_ready(
        vicreg_loss(pred_encs, target_encs, d_tile=256, n_parts=2))
    assert jnp.allclose(loss3, ref, **tol), ("parts", loss3, ref)

    print("KERNEL_OK")
</pallas_src>

<mosaic_0001>
module attributes {stable_mosaic.version = 11 : i64} {
  func.func @kernel(%arg0: i32, %arg1: i32, %arg2: memref<16x2048xf32, #tpu.memory_space<vmem>>, %arg3: memref<16x2048xf32, #tpu.memory_space<vmem>>, %arg4: memref<1x8xf32, #tpu.memory_space<smem>>) attributes {dimension_semantics = [#tpu.dimension_semantics<parallel>, #tpu.dimension_semantics<arbitrary>], iteration_bounds = array<i64: 1, 1>, scalar_prefetch = 0 : i64, scratch_operands = 0 : i64, tpu.core_type = #tpu.core_type<tc>, window_params = [{transform_indices = @transform_0, window_bounds = array<i64: 16, 2048>}, {transform_indices = @transform_1, window_bounds = array<i64: 16, 2048>}, {transform_indices = @transform_2, window_bounds = array<i64: 1, 8>}]} {
    %c0 = arith.constant 0 : index
    %c0_0 = arith.constant 0 : index
    %0 = vector.load %arg2[%c0, %c0_0] : memref<16x2048xf32, #tpu.memory_space<vmem>>, vector<16x2048xf32>
    %c0_1 = arith.constant 0 : index
    %c0_2 = arith.constant 0 : index
    %1 = vector.load %arg3[%c0_1, %c0_2] : memref<16x2048xf32, #tpu.memory_space<vmem>>, vector<16x2048xf32>
    %2 = arith.subf %0, %1 : vector<16x2048xf32>
    %3 = arith.mulf %2, %2 : vector<16x2048xf32>
    %cst = arith.constant dense<0.000000e+00> : vector<2048xf32>
    %4 = vector.multi_reduction <add>, %3, %cst [0] : vector<16x2048xf32> to vector<2048xf32>
    %5 = vector.shape_cast %4 : vector<2048xf32> to vector<1x2048xf32>
    %cst_3 = arith.constant dense<0.000000e+00> : vector<2048xf32>
    %6 = vector.multi_reduction <add>, %0, %cst_3 [0] : vector<16x2048xf32> to vector<2048xf32>
    %7 = vector.shape_cast %6 : vector<2048xf32> to vector<1x2048xf32>
    %cst_4 = arith.constant 1.600000e+01 : f32
    %8 = vector.broadcast %cst_4 : f32 to vector<1x2048xf32>
    %9 = arith.divf %7, %8 : vector<1x2048xf32>
    %10 = vector.broadcast %9 : vector<1x2048xf32> to vector<16x2048xf32>
    %11 = arith.subf %0, %10 : vector<16x2048xf32>
    %cst_5 = arith.constant dense<0.000000e+00> : vector<2048xf32>
    %12 = vector.multi_reduction <add>, %1, %cst_5 [0] : vector<16x2048xf32> to vector<2048xf32>
    %13 = vector.shape_cast %12 : vector<2048xf32> to vector<1x2048xf32>
    %cst_6 = arith.constant 1.600000e+01 : f32
    %14 = vector.broadcast %cst_6 : f32 to vector<1x2048xf32>
    %15 = arith.divf %13, %14 : vector<1x2048xf32>
    %16 = vector.broadcast %15 : vector<1x2048xf32> to vector<16x2048xf32>
    %17 = arith.subf %1, %16 : vector<16x2048xf32>
    %18 = arith.mulf %11, %11 : vector<16x2048xf32>
    %cst_7 = arith.constant dense<0.000000e+00> : vector<2048xf32>
    %19 = vector.multi_reduction <add>, %18, %cst_7 [0] : vector<16x2048xf32> to vector<2048xf32>
    %20 = vector.shape_cast %19 : vector<2048xf32> to vector<1x2048xf32>
    %21 = arith.mulf %17, %17 : vector<16x2048xf32>
    %cst_8 = arith.constant dense<0.000000e+00> : vector<2048xf32>
    %22 = vector.multi_reduction <add>, %21, %cst_8 [0] : vector<16x2048xf32> to vector<2048xf32>
    %23 = vector.shape_cast %22 : vector<2048xf32> to vector<1x2048xf32>
    %cst_9 = arith.constant 0.0666666701 : f32
    %24 = vector.broadcast %cst_9 : f32 to vector<1x2048xf32>
    %25 = arith.mulf %20, %24 : vector<1x2048xf32>
    %cst_10 = arith.constant 9.99999974E-5 : f32
    %26 = vector.broadcast %cst_10 : f32 to vector<1x2048xf32>
    %27 = arith.addf %25, %26 : vector<1x2048xf32>
    %cst_11 = arith.constant 1.000000e+00 : f32
    %28 = vector.broadcast %cst_11 : f32 to vector<1x2048xf32>
    %29 = arith.subf %28, %27 : vector<1x2048xf32>
    %cst_12 = arith.constant 0.000000e+00 : f32
    %30 = vector.broadcast %cst_12 : f32 to vector<1x2048xf32>
    %31 = arith.maximumf %29, %30 : vector<1x2048xf32>
    %cst_13 = arith.constant 0.0666666701 : f32
    %32 = vector.broadcast %cst_13 : f32 to vector<1x2048xf32>
    %33 = arith.mulf %23, %32 : vector<1x2048xf32>
    %cst_14 = arith.constant 9.99999974E-5 : f32
    %34 = vector.broadcast %cst_14 : f32 to vector<1x2048xf32>
    %35 = arith.addf %33, %34 : vector<1x2048xf32>
    %cst_15 = arith.constant 1.000000e+00 : f32
    %36 = vector.broadcast %cst_15 : f32 to vector<1x2048xf32>
    %37 = arith.subf %36, %35 : vector<1x2048xf32>
    %cst_16 = arith.constant 0.000000e+00 : f32
    %38 = vector.broadcast %cst_16 : f32 to vector<1x2048xf32>
    %39 = arith.maximumf %37, %38 : vector<1x2048xf32>
    %40 = arith.mulf %20, %20 : vector<1x2048xf32>
    %41 = arith.mulf %23, %23 : vector<1x2048xf32>
    %cst_17 = arith.constant dense<0.000000e+00> : vector<16x16xf32>
    %42 = tpu.matmul %11, %11, %cst_17 {dimension_numbers = #tpu.dot_dimension_numbers<[1], [1], [0], [0], [0, 0, 1, 0], [], []>} : vector<16x2048xf32>, vector<16x2048xf32>, vector<16x16xf32> -> vector<16x16xf32>
    %cst_18 = arith.constant dense<0.000000e+00> : vector<16x16xf32>
    %43 = tpu.matmul %17, %17, %cst_18 {dimension_numbers = #tpu.dot_dimension_numbers<[1], [1], [0], [0], [0, 0, 1, 0], [], []>} : vector<16x2048xf32>, vector<16x2048xf32>, vector<16x16xf32> -> vector<16x16xf32>
    %44 = vector.shape_cast %5 : vector<1x2048xf32> to vector<1x1x2048xf32>
    %cst_19 = arith.constant dense<0.000000e+00> : vector<1xf32>
    %45 = vector.multi_reduction <add>, %44, %cst_19 [1, 2] : vector<1x1x2048xf32> to vector<1xf32>
    %46 = vector.shape_cast %45 : vector<1xf32> to vector<1x1x1xf32>
    %47 = vector.extract %46[0, 0, 0] : f32 from vector<1x1x1xf32>
    %48 = vector.shape_cast %31 : vector<1x2048xf32> to vector<1x1x2048xf32>
    %cst_20 = arith.constant dense<0.000000e+00> : vector<1xf32>
    %49 = vector.multi_reduction <add>, %48, %cst_20 [1, 2] : vector<1x1x2048xf32> to vector<1xf32>
    %50 = vector.shape_cast %49 : vector<1xf32> to vector<1x1x1xf32>
    %51 = vector.extract %50[0, 0, 0] : f32 from vector<1x1x1xf32>
    %52 = vector.shape_cast %39 : vector<1x2048xf32> to vector<1x1x2048xf32>
    %cst_21 = arith.constant dense<0.000000e+00> : vector<1xf32>
    %53 = vector.multi_reduction <add>, %52, %cst_21 [1, 2] : vector<1x1x2048xf32> to vector<1xf32>
    %54 = vector.shape_cast %53 : vector<1xf32> to vector<1x1x1xf32>
    %55 = vector.extract %54[0, 0, 0] : f32 from vector<1x1x1xf32>
    %56 = vector.shape_cast %40 : vector<1x2048xf32> to vector<1x1x2048xf32>
    %cst_22 = arith.constant dense<0.000000e+00> : vector<1xf32>
    %57 = vector.multi_reduction <add>, %56, %cst_22 [1, 2] : vector<1x1x2048xf32> to vector<1xf32>
    %58 = vector.shape_cast %57 : vector<1xf32> to vector<1x1x1xf32>
    %59 = vector.extract %58[0, 0, 0] : f32 from vector<1x1x1xf32>
    %60 = vector.shape_cast %41 : vector<1x2048xf32> to vector<1x1x2048xf32>
    %cst_23 = arith.constant dense<0.000000e+00> : vector<1xf32>
    %61 = vector.multi_reduction <add>, %60, %cst_23 [1, 2] : vector<1x1x2048xf32> to vector<1xf32>
    %62 = vector.shape_cast %61 : vector<1xf32> to vector<1x1x1xf32>
    %63 = vector.extract %62[0, 0, 0] : f32 from vector<1x1x1xf32>
    %64 = arith.mulf %42, %42 : vector<16x16xf32>
    %65 = vector.shape_cast %64 : vector<16x16xf32> to vector<1x16x16xf32>
    %cst_24 = arith.constant dense<0.000000e+00> : vector<1xf32>
    %66 = vector.multi_reduction <add>, %65, %cst_24 [1, 2] : vector<1x16x16xf32> to vector<1xf32>
    %67 = vector.shape_cast %66 : vector<1xf32> to vector<1x1x1xf32>
    %68 = vector.extract %67[0, 0, 0] : f32 from vector<1x1x1xf32>
    %69 = arith.mulf %43, %43 : vector<16x16xf32>
    %70 = vector.shape_cast %69 : vector<16x16xf32> to vector<1x16x16xf32>
    %cst_25 = arith.constant dense<0.000000e+00> : vector<1xf32>
    %71 = vector.multi_reduction <add>, %70, %cst_25 [1, 2] : vector<1x16x16xf32> to vector<1xf32>
    %72 = vector.shape_cast %71 : vector<1xf32> to vector<1x1x1xf32>
    %73 = vector.extract %72[0, 0, 0] : f32 from vector<1x1x1xf32>
    %c0_26 = arith.constant 0 : index
    %c0_27 = arith.constant 0 : index
    %74 = memref.load %arg4[%c0_26, %c0_27] : memref<1x8xf32, #tpu.memory_space<smem>>
    memref.store %47, %arg4[%c0_26, %c0_27] : memref<1x8xf32, #tpu.memory_space<smem>>
    %c0_28 = arith.constant 0 : index
    %c1 = arith.constant 1 : index
    %75 = memref.load %arg4[%c0_28, %c1] : memref<1x8xf32, #tpu.memory_space<smem>>
    memref.store %51, %arg4[%c0_28, %c1] : memref<1x8xf32, #tpu.memory_space<smem>>
    %c0_29 = arith.constant 0 : index
    %c2 = arith.constant 2 : index
    %76 = memref.load %arg4[%c0_29, %c2] : memref<1x8xf32, #tpu.memory_space<smem>>
    memref.store %55, %arg4[%c0_29, %c2] : memref<1x8xf32, #tpu.memory_space<smem>>
    %c0_30 = arith.constant 0 : index
    %c3 = arith.constant 3 : index
    %77 = memref.load %arg4[%c0_30, %c3] : memref<1x8xf32, #tpu.memory_space<smem>>
    memref.store %59, %arg4[%c0_30, %c3] : memref<1x8xf32, #tpu.memory_space<smem>>
    %c0_31 = arith.constant 0 : index
    %c4 = arith.constant 4 : index
    %78 = memref.load %arg4[%c0_31, %c4] : memref<1x8xf32, #tpu.memory_space<smem>>
    memref.store %63, %arg4[%c0_31, %c4] : memref<1x8xf32, #tpu.memory_space<smem>>
    %c0_32 = arith.constant 0 : index
    %c5 = arith.constant 5 : index
    %79 = memref.load %arg4[%c0_32, %c5] : memref<1x8xf32, #tpu.memory_space<smem>>
    memref.store %68, %arg4[%c0_32, %c5] : memref<1x8xf32, #tpu.memory_space<smem>>
    %c0_33 = arith.constant 0 : index
    %c6 = arith.constant 6 : index
    %80 = memref.load %arg4[%c0_33, %c6] : memref<1x8xf32, #tpu.memory_space<smem>>
    memref.store %73, %arg4[%c0_33, %c6] : memref<1x8xf32, #tpu.memory_space<smem>>
    %cst_34 = arith.constant 0.000000e+00 : f32
    %c0_35 = arith.constant 0 : index
    %c7 = arith.constant 7 : index
    %81 = memref.load %arg4[%c0_35, %c7] : memref<1x8xf32, #tpu.memory_space<smem>>
    memref.store %cst_34, %arg4[%c0_35, %c7] : memref<1x8xf32, #tpu.memory_space<smem>>
    return
  }
  func.func @transform_0(%arg0: i32, %arg1: i32) -> (i32, i32) {
    %c1_i32 = arith.constant 1 : i32
    %0 = arith.muli %arg0, %c1_i32 : i32
    %1 = arith.addi %0, %arg1 : i32
    %c0_i32 = arith.constant 0 : i32
    %c0_i32_0 = arith.constant 0 : i32
    return %c0_i32, %1 : i32, i32
  }
  func.func @transform_1(%arg0: i32, %arg1: i32) -> (i32, i32) {
    %c1_i32 = arith.constant 1 : i32
    %0 = arith.muli %arg0, %c1_i32 : i32
    %1 = arith.addi %0, %arg1 : i32
    %c0_i32 = arith.constant 0 : i32
    %c0_i32_0 = arith.constant 0 : i32
    return %c0_i32, %1 : i32, i32
  }
  func.func @transform_2(%arg0: i32, %arg1: i32) -> (i32, i32) {
    %c0_i32 = arith.constant 0 : i32
    %c0_i32_0 = arith.constant 0 : i32
    return %arg0, %c0_i32 : i32, i32
  }
}

</mosaic_0001>

<llo_original>
// kernel: tpu_custom_call.1
$region0: #{tpu_custom_call.1}
  #allocation0 [shape = 'u32[]', space=smem, size = 0x4, offset = 0x4, fixed_abs, tag = 'smem constant byte address 0x4 - core index']
  #allocation1 [shape = 'u32[144,128]{1,0:T(1,128)}', space=vmem, size = 0x12000, scoped, tag = 'internal scratch']
  %s0 = inlined_call_operand.hbm [shape: f32[16,2048], index: 0, kind: input, shape index: {}]
  %s1 = inlined_call_operand.hbm [shape: f32[16,2048], index: 1, kind: input, shape index: {}]
  %s2 = inlined_call_operand.hbm [shape: f32[1,8], index: 2, kind: output, shape index: {}]
  %s3 = sld [smem:[#allocation0]]
  $region26: #{tpu_custom_call.1} parent=0
    _
  %s5 = ssub.s32 1, %s3
  %s6 = scalar_select 0, %s5, %s3
  $region1: #{tpu_custom_call.1} parent=0
    #allocation2 [shape = 'u8[131072]{0}', space=vmem, size = 0x20000, scoped, tag = 'input window, operand 0, single buffered']
    #allocation3 [shape = 's32[1]{0}', space=sflag, size = 0x4, scoped, tag = 'scoped memory for tpu_custom_call.1']
    #allocation4 [shape = 's32[1]{0}', space=sflag, size = 0x4, scoped, tag = 'scoped memory for tpu_custom_call.1']
    #allocation5 [shape = 'u8[131072]{0}', space=vmem, size = 0x20000, scoped, tag = 'input window, operand 1, single buffered']
    #allocation6 [shape = 's32[1]{0}', space=sflag, size = 0x4, scoped, tag = 'scoped memory for tpu_custom_call.1']
    #allocation7 [shape = 'u8[512]{0}', space=smem, size = 0x200, scoped, tag = 'output window, operand 0, single buffered']
    %7 = vsyncpa [#allocation3], 0
    %8 = vsyncpa [#allocation6], 0
    %9 = vsyncpa [#allocation4], 0
    // Predicated region
    $region2: #{tpu_custom_call.1} parent=1 // pred_check
      _
    $region3: #{tpu_custom_call.1} parent=1 // pred_check_branch
      %11 = sbr.rel (0) target = $region5
    $region4: #{tpu_custom_call.1} parent=1 // pred_region
      %s12 = sadd.s32 0, 0
      %s13 = smul.u32 16, %s12
      %s15 = ssub.s32 4096, 4096
      %16 = vsyncadd [#allocation3], %s15
      %s17 = smul.addr %s13, 128
      %s18 = scalar_lea.hbm %s0, %s17
      %s19 = sshll.u32 [#allocation2], 4
      %s20 = int_to_ptr.vmem [resolvable:$true] %s19
      %25 = dma.hbm_to_vmem [thread:$0]  %s18, 4096, %s20, [#allocation3], 2048, 2048, 128
    $region5: #{tpu_custom_call.1} parent=1 // pred_fallthru
      _
    // Predicated region
    $region6: #{tpu_custom_call.1} parent=1 // pred_check
      _
    $region7: #{tpu_custom_call.1} parent=1 // pred_check_branch
      %27 = sbr.rel (0) target = $region9
    $region8: #{tpu_custom_call.1} parent=1 // pred_region
      %s28 = sadd.s32 0, 0
      %s29 = smul.u32 16, %s28
      %s31 = ssub.s32 4096, 4096
      %32 = vsyncadd [#allocation6], %s31
      %s33 = smul.addr %s29, 128
      %s34 = scalar_lea.hbm %s1, %s33
      %s35 = sshll.u32 [#allocation5], 4
      %s36 = int_to_ptr.vmem [resolvable:$true] %s35
      %41 = dma.hbm_to_vmem [thread:$0]  %s34, 4096, %s36, [#allocation6], 2048, 2048, 128
    $region9: #{tpu_custom_call.1} parent=1 // pred_fallthru
      _
    // Predicated region
    $region10: #{tpu_custom_call.1} parent=1 // pred_check
      _
    $region11: #{tpu_custom_call.1} parent=1 // pred_check_branch
      %43 = sbr.rel (0) target = $region13
    $region12: #{tpu_custom_call.1} parent=1 // pred_region
      %44 = dma.done [#allocation3], 4096
    $region13: #{tpu_custom_call.1} parent=1 // pred_fallthru
      _
    // Predicated region
    $region14: #{tpu_custom_call.1} parent=1 // pred_check
      _
    $region15: #{tpu_custom_call.1} parent=1 // pred_check_branch
      %46 = sbr.rel (0) target = $region17
    $region16: #{tpu_custom_call.1} parent=1 // pred_region
      %47 = dma.done [#allocation6], 4096
    $region17: #{tpu_custom_call.1} parent=1 // pred_fallthru
      _
    %s48 = sadd.s32 0, 0
    %s49 = smul.u32 16, %s48
    %s50 = sadd.s32 0, 0
    %s51 = smul.u32 16, %s50
    %v52 = vld [vmem:[#allocation2] sm:$0xff]
    %v53 = vld [vmem:[#allocation2 + $0x8] sm:$0xff]
    %v54 = vld [vmem:[#allocation2 + $0x10] sm:$0xff]
    %v55 = vld [vmem:[#allocation2 + $0x18] sm:$0xff]
    %v56 = vld [vmem:[#allocation2 + $0x20] sm:$0xff]
    %v57 = vld [vmem:[#allocation2 + $0x28] sm:$0xff]
    %v58 = vld [vmem:[#allocation2 + $0x30] sm:$0xff]
    %v59 = vld [vmem:[#allocation2 + $0x38] sm:$0xff]
    %v60 = vld [vmem:[#allocation2 + $0x40] sm:$0xff]
    %v61 = vld [vmem:[#allocation2 + $0x48] sm:$0xff]
    %v62 = vld [vmem:[#allocation2 + $0x50] sm:$0xff]
    %v63 = vld [vmem:[#allocation2 + $0x58] sm:$0xff]
    %v64 = vld [vmem:[#allocation2 + $0x60] sm:$0xff]
    %v65 = vld [vmem:[#allocation2 + $0x68] sm:$0xff]
    %v66 = vld [vmem:[#allocation2 + $0x70] sm:$0xff]
    %v67 = vld [vmem:[#allocation2 + $0x78] sm:$0xff]
    %v68 = vld [vmem:[#allocation2 + $0x80] sm:$0xff]
    %v69 = vld [vmem:[#allocation2 + $0x88] sm:$0xff]
    %v70 = vld [vmem:[#allocation2 + $0x90] sm:$0xff]
    %v71 = vld [vmem:[#allocation2 + $0x98] sm:$0xff]
    %v72 = vld [vmem:[#allocation2 + $0xa0] sm:$0xff]
    %v73 = vld [vmem:[#allocation2 + $0xa8] sm:$0xff]
    %v74 = vld [vmem:[#allocation2 + $0xb0] sm:$0xff]
    %v75 = vld [vmem:[#allocation2 + $0xb8] sm:$0xff]
    %v76 = vld [vmem:[#allocation2 + $0xc0] sm:$0xff]
    %v77 = vld [vmem:[#allocation2 + $0xc8] sm:$0xff]
    %v78 = vld [vmem:[#allocation2 + $0xd0] sm:$0xff]
    %v79 = vld [vmem:[#allocation2 + $0xd8] sm:$0xff]
    %v80 = vld [vmem:[#allocation2 + $0xe0] sm:$0xff]
    %v81 = vld [vmem:[#allocation2 + $0xe8] sm:$0xff]
    %v82 = vld [vmem:[#allocation2 + $0xf0] sm:$0xff]
    %v83 = vld [vmem:[#allocation2 + $0xf8] sm:$0xff]
    %v84 = vld [vmem:[#allocation5] sm:$0xff]
    %v85 = vld [vmem:[#allocation5 + $0x8] sm:$0xff]
    %v86 = vld [vmem:[#allocation5 + $0x10] sm:$0xff]
    %v87 = vld [vmem:[#allocation5 + $0x18] sm:$0xff]
    %v88 = vld [vmem:[#allocation5 + $0x20] sm:$0xff]
    %v89 = vld [vmem:[#allocation5 + $0x28] sm:$0xff]
    %v90 = vld [vmem:[#allocation5 + $0x30] sm:$0xff]
    %v91 = vld [vmem:[#allocation5 + $0x38] sm:$0xff]
    %v92 = vld [vmem:[#allocation5 + $0x40] sm:$0xff]
    %v93 = vld [vmem:[#allocation5 + $0x48] sm:$0xff]
    %v94 = vld [vmem:[#allocation5 + $0x50] sm:$0xff]
    %v95 = vld [vmem:[#allocation5 + $0x58] sm:$0xff]
    %v96 = vld [vmem:[#allocation5 + $0x60] sm:$0xff]
    %v97 = vld [vmem:[#allocation5 + $0x68] sm:$0xff]
    %v98 = vld [vmem:[#allocation5 + $0x70] sm:$0xff]
    %v99 = vld [vmem:[#allocation5 + $0x78] sm:$0xff]
    %v100 = vld [vmem:[#allocation5 + $0x80] sm:$0xff]
    %v101 = vld [vmem:[#allocation5 + $0x88] sm:$0xff]
    %v102 = vld [vmem:[#allocation5 + $0x90] sm:$0xff]
    %v103 = vld [vmem:[#allocation5 + $0x98] sm:$0xff]
    %v104 = vld [vmem:[#allocation5 + $0xa0] sm:$0xff]
    %v105 = vld [vmem:[#allocation5 + $0xa8] sm:$0xff]
    %v106 = vld [vmem:[#allocation5 + $0xb0] sm:$0xff]
    %v107 = vld [vmem:[#allocation5 + $0xb8] sm:$0xff]
    %v108 = vld [vmem:[#allocation5 + $0xc0] sm:$0xff]
    %v109 = vld [vmem:[#allocation5 + $0xc8] sm:$0xff]
    %v110 = vld [vmem:[#allocation5 + $0xd0] sm:$0xff]
    %v111 = vld [vmem:[#allocation5 + $0xd8] sm:$0xff]
    %v112 = vld [vmem:[#allocation5 + $0xe0] sm:$0xff]
    %v113 = vld [vmem:[#allocation5 + $0xe8] sm:$0xff]
    %v114 = vld [vmem:[#allocation5 + $0xf0] sm:$0xff]
    %v115 = vld [vmem:[#allocation5 + $0xf8] sm:$0xff]
    %v116 = vsub.f32 %v52, %v84
    %v117 = vsub.f32 %v53, %v85
    %v118 = vsub.f32 %v54, %v86
    %v119 = vsub.f32 %v55, %v87
    %v120 = vsub.f32 %v56, %v88
    %v121 = vsub.f32 %v57, %v89
    %v122 = vsub.f32 %v58, %v90
    %v123 = vsub.f32 %v59, %v91
    %v124 = vsub.f32 %v60, %v92
    %v125 = vsub.f32 %v61, %v93
    %v126 = vsub.f32 %v62, %v94
    %v127 = vsub.f32 %v63, %v95
    %v128 = vsub.f32 %v64, %v96
    %v129 = vsub.f32 %v65, %v97
    %v130 = vsub.f32 %v66, %v98
    %v131 = vsub.f32 %v67, %v99
    %v132 = vsub.f32 %v68, %v100
    %v133 = vsub.f32 %v69, %v101
    %v134 = vsub.f32 %v70, %v102
    %v135 = vsub.f32 %v71, %v103
    %v136 = vsub.f32 %v72, %v104
    %v137 = vsub.f32 %v73, %v105
    %v138 = vsub.f32 %v74, %v106
    %v139 = vsub.f32 %v75, %v107
    %v140 = vsub.f32 %v76, %v108
    %v141 = vsub.f32 %v77, %v109
    %v142 = vsub.f32 %v78, %v110
    %v143 = vsub.f32 %v79, %v111
    %v144 = vsub.f32 %v80, %v112
    %v145 = vsub.f32 %v81, %v113
    %v146 = vsub.f32 %v82, %v114
    %v147 = vsub.f32 %v83, %v115
    %v148 = vmul.f32 %v116, %v116
    %v149 = vmul.f32 %v117, %v117
    %v150 = vmul.f32 %v118, %v118
    %v151 = vmul.f32 %v119, %v119
    %v152 = vmul.f32 %v120, %v120
    %v153 = vmul.f32 %v121, %v121
    %v154 = vmul.f32 %v122, %v122
    %v155 = vmul.f32 %v123, %v123
    %v156 = vmul.f32 %v124, %v124
    %v157 = vmul.f32 %v125, %v125
    %v158 = vmul.f32 %v126, %v126
    %v159 = vmul.f32 %v127, %v127
    %v160 = vmul.f32 %v128, %v128
    %v161 = vmul.f32 %v129, %v129
    %v162 = vmul.f32 %v130, %v130
    %v163 = vmul.f32 %v131, %v131
    %v164 = vmul.f32 %v132, %v132
    %v165 = vmul.f32 %v133, %v133
    %v166 = vmul.f32 %v134, %v134
    %v167 = vmul.f32 %v135, %v135
    %v168 = vmul.f32 %v136, %v136
    %v169 = vmul.f32 %v137, %v137
    %v170 = vmul.f32 %v138, %v138
    %v171 = vmul.f32 %v139, %v139
    %v172 = vmul.f32 %v140, %v140
    %v173 = vmul.f32 %v141, %v141
    %v174 = vmul.f32 %v142, %v142
    %v175 = vmul.f32 %v143, %v143
    %v176 = vmul.f32 %v144, %v144
    %v177 = vmul.f32 %v145, %v145
    %v178 = vmul.f32 %v146, %v146
    %v179 = vmul.f32 %v147, %v147
    %v180 = vadd.f32 %v148, %v164
    %v181 = vrot.slane %v180, 4
    %v182 = vadd.f32 %v180, %v181
    %v183 = vrot.slane %v182, 2
    %v184 = vadd.f32 %v182, %v183
    %v185 = vrot.slane %v184, 1
    %v186 = vadd.f32 %v184, %v185
    %v187 = vadd.f32 %v149, %v165
    %v188 = vrot.slane %v187, 4
    %v189 = vadd.f32 %v187, %v188
    %v190 = vrot.slane %v189, 2
    %v191 = vadd.f32 %v189, %v190
    %v192 = vrot.slane %v191, 1
    %v193 = vadd.f32 %v191, %v192
    %v194 = vadd.f32 %v150, %v166
    %v195 = vrot.slane %v194, 4
    %v196 = vadd.f32 %v194, %v195
    %v197 = vrot.slane %v196, 2
    %v198 = vadd.f32 %v196, %v197
    %v199 = vrot.slane %v198, 1
    %v200 = vadd.f32 %v198, %v199
    %v201 = vadd.f32 %v151, %v167
    %v202 = vrot.slane %v201, 4
    %v203 = vadd.f32 %v201, %v202
    %v204 = vrot.slane %v203, 2
    %v205 = vadd.f32 %v203, %v204
    %v206 = vrot.slane %v205, 1
    %v207 = vadd.f32 %v205, %v206
    %v208 = vadd.f32 %v152, %v168
    %v209 = vrot.slane %v208, 4
    %v210 = vadd.f32 %v208, %v209
    %v211 = vrot.slane %v210, 2
    %v212 = vadd.f32 %v210, %v211
    %v213 = vrot.slane %v212, 1
    %v214 = vadd.f32 %v212, %v213
    %v215 = vadd.f32 %v153, %v169
    %v216 = vrot.slane %v215, 4
    %v217 = vadd.f32 %v215, %v216
    %v218 = vrot.slane %v217, 2
    %v219 = vadd.f32 %v217, %v218
    %v220 = vrot.slane %v219, 1
    %v221 = vadd.f32 %v219, %v220
    %v222 = vadd.f32 %v154, %v170
    %v223 = vrot.slane %v222, 4
    %v224 = vadd.f32 %v222, %v223
    %v225 = vrot.slane %v224, 2
    %v226 = vadd.f32 %v224, %v225
    %v227 = vrot.slane %v226, 1
    %v228 = vadd.f32 %v226, %v227
    %v229 = vadd.f32 %v155, %v171
    %v230 = vrot.slane %v229, 4
    %v231 = vadd.f32 %v229, %v230
    %v232 = vrot.slane %v231, 2
    %v233 = vadd.f32 %v231, %v232
    %v234 = vrot.slane %v233, 1
    %v235 = vadd.f32 %v233, %v234
    %v236 = vadd.f32 %v156, %v172
    %v237 = vrot.slane %v236, 4
    %v238 = vadd.f32 %v236, %v237
    %v239 = vrot.slane %v238, 2
    %v240 = vadd.f32 %v238, %v239
    %v241 = vrot.slane %v240, 1
    %v242 = vadd.f32 %v240, %v241
    %v243 = vadd.f32 %v157, %v173
    %v244 = vrot.slane %v243, 4
    %v245 = vadd.f32 %v243, %v244
    %v246 = vrot.slane %v245, 2
    %v247 = vadd.f32 %v245, %v246
    %v248 = vrot.slane %v247, 1
    %v249 = vadd.f32 %v247, %v248
    %v250 = vadd.f32 %v158, %v174
    %v251 = vrot.slane %v250, 4
    %v252 = vadd.f32 %v250, %v251
    %v253 = vrot.slane %v252, 2
    %v254 = vadd.f32 %v252, %v253
    %v255 = vrot.slane %v254, 1
    %v256 = vadd.f32 %v254, %v255
    %v257 = vadd.f32 %v159, %v175
    %v258 = vrot.slane %v257, 4
    %v259 = vadd.f32 %v257, %v258
    %v260 = vrot.slane %v259, 2
    %v261 = vadd.f32 %v259, %v260
    %v262 = vrot.slane %v261, 1
    %v263 = vadd.f32 %v261, %v262
    %v264 = vadd.f32 %v160, %v176
    %v265 = vrot.slane %v264, 4
    %v266 = vadd.f32 %v264, %v265
    %v267 = vrot.slane %v266, 2
    %v268 = vadd.f32 %v266, %v267
    %v269 = vrot.slane %v268, 1
    %v270 = vadd.f32 %v268, %v269
    %v271 = vadd.f32 %v161, %v177
    %v272 = vrot.slane %v271, 4
    %v273 = vadd.f32 %v271, %v272
    %v274 = vrot.slane %v273, 2
    %v275 = vadd.f32 %v273, %v274
    %v276 = vrot.slane %v275, 1
    %v277 = vadd.f32 %v275, %v276
    %v278 = vadd.f32 %v162, %v178
    %v279 = vrot.slane %v278, 4
    %v280 = vadd.f32 %v278, %v279
    %v281 = vrot.slane %v280, 2
    %v282 = vadd.f32 %v280, %v281
    %v283 = vrot.slane %v282, 1
    %v284 = vadd.f32 %v282, %v283
    %v285 = vadd.f32 %v163, %v179
    %v286 = vrot.slane %v285, 4
    %v287 = vadd.f32 %v285, %v286
    %v288 = vrot.slane %v287, 2
    %v289 = vadd.f32 %v287, %v288
    %v290 = vrot.slane %v289, 1
    %v291 = vadd.f32 %v289, %v290
    %v292 = vadd.f32 %v52, %v68
    %v293 = vrot.slane %v292, 4
    %v294 = vadd.f32 %v292, %v293
    %v295 = vrot.slane %v294, 2
    %v296 = vadd.f32 %v294, %v295
    %v297 = vrot.slane %v296, 1
    %v298 = vadd.f32 %v296, %v297
    %v299 = vadd.f32 %v53, %v69
    %v300 = vrot.slane %v299, 4
    %v301 = vadd.f32 %v299, %v300
    %v302 = vrot.slane %v301, 2
    %v303 = vadd.f32 %v301, %v302
    %v304 = vrot.slane %v303, 1
    %v305 = vadd.f32 %v303, %v304
    %v306 = vadd.f32 %v54, %v70
    %v307 = vrot.slane %v306, 4
    %v308 = vadd.f32 %v306, %v307
    %v309 = vrot.slane %v308, 2
    %v310 = vadd.f32 %v308, %v309
    %v311 = vrot.slane %v310, 1
    %v312 = vadd.f32 %v310, %v311
    %v313 = vadd.f32 %v55, %v71
    %v314 = vrot.slane %v313, 4
    %v315 = vadd.f32 %v313, %v314
    %v316 = vrot.slane %v315, 2
    %v317 = vadd.f32 %v315, %v316
    %v318 = vrot.slane %v317, 1
    %v319 = vadd.f32 %v317, %v318
    %v320 = vadd.f32 %v56, %v72
    %v321 = vrot.slane %v320, 4
    %v322 = vadd.f32 %v320, %v321
    %v323 = vrot.slane %v322, 2
    %v324 = vadd.f32 %v322, %v323
    %v325 = vrot.slane %v324, 1
    %v326 = vadd.f32 %v324, %v325
    %v327 = vadd.f32 %v57, %v73
    %v328 = vrot.slane %v327, 4
    %v329 = vadd.f32 %v327, %v328
    %v330 = vrot.slane %v329, 2
    %v331 = vadd.f32 %v329, %v330
    %v332 = vrot.slane %v331, 1
    %v333 = vadd.f32 %v331, %v332
    %v334 = vadd.f32 %v58, %v74
    %v335 = vrot.slane %v334, 4
    %v336 = vadd.f32 %v334, %v335
    %v337 = vrot.slane %v336, 2
    %v338 = vadd.f32 %v336, %v337
    %v339 = vrot.slane %v338, 1
    %v340 = vadd.f32 %v338, %v339
    %v341 = vadd.f32 %v59, %v75
    %v342 = vrot.slane %v341, 4
    %v343 = vadd.f32 %v341, %v342
    %v344 = vrot.slane %v343, 2
    %v345 = vadd.f32 %v343, %v344
    %v346 = vrot.slane %v345, 1
    %v347 = vadd.f32 %v345, %v346
    %v348 = vadd.f32 %v60, %v76
    %v349 = vrot.slane %v348, 4
    %v350 = vadd.f32 %v348, %v349
    %v351 = vrot.slane %v350, 2
    %v352 = vadd.f32 %v350, %v351
    %v353 = vrot.slane %v352, 1
    %v354 = vadd.f32 %v352, %v353
    %v355 = vadd.f32 %v61, %v77
    %v356 = vrot.slane %v355, 4
    %v357 = vadd.f32 %v355, %v356
    %v358 = vrot.slane %v357, 2
    %v359 = vadd.f32 %v357, %v358
    %v360 = vrot.slane %v359, 1
    %v361 = vadd.f32 %v359, %v360
    %v362 = vadd.f32 %v62, %v78
    %v363 = vrot.slane %v362, 4
    %v364 = vadd.f32 %v362, %v363
    %v365 = vrot.slane %v364, 2
    %v366 = vadd.f32 %v364, %v365
    %v367 = vrot.slane %v366, 1
    %v368 = vadd.f32 %v366, %v367
    %v369 = vadd.f32 %v63, %v79
    %v370 = vrot.slane %v369, 4
    %v371 = vadd.f32 %v369, %v370
    %v372 = vrot.slane %v371, 2
    %v373 = vadd.f32 %v371, %v372
    %v374 = vrot.slane %v373, 1
    %v375 = vadd.f32 %v373, %v374
    %v376 = vadd.f32 %v64, %v80
    %v377 = vrot.slane %v376, 4
    %v378 = vadd.f32 %v376, %v377
    %v379 = vrot.slane %v378, 2
    %v380 = vadd.f32 %v378, %v379
    %v381 = vrot.slane %v380, 1
    %v382 = vadd.f32 %v380, %v381
    %v383 = vadd.f32 %v65, %v81
    %v384 = vrot.slane %v383, 4
    %v385 = vadd.f32 %v383, %v384
    %v386 = vrot.slane %v385, 2
    %v387 = vadd.f32 %v385, %v386
    %v388 = vrot.slane %v387, 1
    %v389 = vadd.f32 %v387, %v388
    %v390 = vadd.f32 %v66, %v82
    %v391 = vrot.slane %v390, 4
    %v392 = vadd.f32 %v390, %v391
    %v393 = vrot.slane %v392, 2
    %v394 = vadd.f32 %v392, %v393
    %v395 = vrot.slane %v394, 1
    %v396 = vadd.f32 %v394, %v395
    %v397 = vadd.f32 %v67, %v83
    %v398 = vrot.slane %v397, 4
    %v399 = vadd.f32 %v397, %v398
    %v400 = vrot.slane %v399, 2
    %v401 = vadd.f32 %v399, %v400
    %v402 = vrot.slane %v401, 1
    %v403 = vadd.f32 %v401, %v402
    %v404 = vrcp.pop 16.0
    %v405 = vmul.f32 %v298, %v404
    %v406 = vmul.f32 %v305, %v404
    %v407 = vmul.f32 %v312, %v404
    %v408 = vmul.f32 %v319, %v404
    %v409 = vmul.f32 %v326, %v404
    %v410 = vmul.f32 %v333, %v404
    %v411 = vmul.f32 %v340, %v404
    %v412 = vmul.f32 %v347, %v404
    %v413 = vmul.f32 %v354, %v404
    %v414 = vmul.f32 %v361, %v404
    %v415 = vmul.f32 %v368, %v404
    %v416 = vmul.f32 %v375, %v404
    %v417 = vmul.f32 %v382, %v404
    %v418 = vmul.f32 %v389, %v404
    %v419 = vmul.f32 %v396, %v404
    %v420 = vmul.f32 %v403, %v404
    %v421 = vsub.f32 %v52, %v405
    %v422 = vsub.f32 %v53, %v406
    %v423 = vsub.f32 %v54, %v407
    %v424 = vsub.f32 %v55, %v408
    %v425 = vsub.f32 %v56, %v409
    %v426 = vsub.f32 %v57, %v410
    %v427 = vsub.f32 %v58, %v411
    %v428 = vsub.f32 %v59, %v412
    %v429 = vsub.f32 %v60, %v413
    %v430 = vsub.f32 %v61, %v414
    %v431 = vsub.f32 %v62, %v415
    %v432 = vsub.f32 %v63, %v416
    %v433 = vsub.f32 %v64, %v417
    %v434 = vsub.f32 %v65, %v418
    %v435 = vsub.f32 %v66, %v419
    %v436 = vsub.f32 %v67, %v420
    %v437 = vsub.f32 %v68, %v405
    %v438 = vsub.f32 %v69, %v406
    %v439 = vsub.f32 %v70, %v407
    %v440 = vsub.f32 %v71, %v408
    %v441 = vsub.f32 %v72, %v409
    %v442 = vsub.f32 %v73, %v410
    %v443 = vsub.f32 %v74, %v411
    %v444 = vsub.f32 %v75, %v412
    %v445 = vsub.f32 %v76, %v413
    %v446 = vsub.f32 %v77, %v414
    %v447 = vsub.f32 %v78, %v415
    %v448 = vsub.f32 %v79, %v416
    %v449 = vsub.f32 %v80, %v417
    %v450 = vsub.f32 %v81, %v418
    %v451 = vsub.f32 %v82, %v419
    %v452 = vsub.f32 %v83, %v420
    %v453 = vadd.f32 %v84, %v100
    %v454 = vrot.slane %v453, 4
    %v455 = vadd.f32 %v453, %v454
    %v456 = vrot.slane %v455, 2
    %v457 = vadd.f32 %v455, %v456
    %v458 = vrot.slane %v457, 1
    %v459 = vadd.f32 %v457, %v458
    %v460 = vadd.f32 %v85, %v101
    %v461 = vrot.slane %v460, 4
    %v462 = vadd.f32 %v460, %v461
    %v463 = vrot.slane %v462, 2
    %v464 = vadd.f32 %v462, %v463
    %v465 = vrot.slane %v464, 1
    %v466 = vadd.f32 %v464, %v465
    %v467 = vadd.f32 %v86, %v102
    %v468 = vrot.slane %v467, 4
    %v469 = vadd.f32 %v467, %v468
    %v470 = vrot.slane %v469, 2
    %v471 = vadd.f32 %v469, %v470
    %v472 = vrot.slane %v471, 1
    %v473 = vadd.f32 %v471, %v472
    %v474 = vadd.f32 %v87, %v103
    %v475 = vrot.slane %v474, 4
    %v476 = vadd.f32 %v474, %v475
    %v477 = vrot.slane %v476, 2
    %v478 = vadd.f32 %v476, %v477
    %v479 = vrot.slane %v478, 1
    %v480 = vadd.f32 %v478, %v479
    %v481 = vadd.f32 %v88, %v104
    %v482 = vrot.slane %v481, 4
    %v483 = vadd.f32 %v481, %v482
    %v484 = vrot.slane %v483, 2
    %v485 = vadd.f32 %v483, %v484
    %v486 = vrot.slane %v485, 1
    %v487 = vadd.f32 %v485, %v486
    %v488 = vadd.f32 %v89, %v105
    %v489 = vrot.slane %v488, 4
    %v490 = vadd.f32 %v488, %v489
    %v491 = vrot.slane %v490, 2
    %v492 = vadd.f32 %v490, %v491
    %v493 = vrot.slane %v492, 1
    %v494 = vadd.f32 %v492, %v493
    %v495 = vadd.f32 %v90, %v106
    %v496 = vrot.slane %v495, 4
    %v497 = vadd.f32 %v495, %v496
    %v498 = vrot.slane %v497, 2
    %v499 = vadd.f32 %v497, %v498
    %v500 = vrot.slane %v499, 1
    %v501 = vadd.f32 %v499, %v500
    %v502 = vadd.f32 %v91, %v107
    %v503 = vrot.slane %v502, 4
    %v504 = vadd.f32 %v502, %v503
    %v505 = vrot.slane %v504, 2
    %v506 = vadd.f32 %v504, %v505
    %v507 = vrot.slane %v506, 1
    %v508 = vadd.f32 %v506, %v507
    %v509 = vadd.f32 %v92, %v108
    %v510 = vrot.slane %v509, 4
    %v511 = vadd.f32 %v509, %v510
    %v512 = vrot.slane %v511, 2
    %v513 = vadd.f32 %v511, %v512
    %v514 = vrot.slane %v513, 1
    %v515 = vadd.f32 %v513, %v514
    %v516 = vadd.f32 %v93, %v109
    %v517 = vrot.slane %v516, 4
    %v518 = vadd.f32 %v516, %v517
    %v519 = vrot.slane %v518, 2
    %v520 = vadd.f32 %v518, %v519
    %v521 = vrot.slane %v520, 1
    %v522 = vadd.f32 %v520, %v521
    %v523 = vadd.f32 %v94, %v110
    %v524 = vrot.slane %v523, 4
    %v525 = vadd.f32 %v523, %v524
    %v526 = vrot.slane %v525, 2
    %v527 = vadd.f32 %v525, %v526
    %v528 = vrot.slane %v527, 1
    %v529 = vadd.f32 %v527, %v528
    %v530 = vadd.f32 %v95, %v111
    %v531 = vrot.slane %v530, 4
    %v532 = vadd.f32 %v530, %v531
    %v533 = vrot.slane %v532, 2
    %v534 = vadd.f32 %v532, %v533
    %v535 = vrot.slane %v534, 1
    %v536 = vadd.f32 %v534, %v535
    %v537 = vadd.f32 %v96, %v112
    %v538 = vrot.slane %v537, 4
    %v539 = vadd.f32 %v537, %v538
    %v540 = vrot.slane %v539, 2
    %v541 = vadd.f32 %v539, %v540
    %v542 = vrot.slane %v541, 1
    %v543 = vadd.f32 %v541, %v542
    %v544 = vadd.f32 %v97, %v113
    %v545 = vrot.slane %v544, 4
    %v546 = vadd.f32 %v544, %v545
    %v547 = vrot.slane %v546, 2
    %v548 = vadd.f32 %v546, %v547
    %v549 = vrot.slane %v548, 1
    %v550 = vadd.f32 %v548, %v549
    %v551 = vadd.f32 %v98, %v114
    %v552 = vrot.slane %v551, 4
    %v553 = vadd.f32 %v551, %v552
    %v554 = vrot.slane %v553, 2
    %v555 = vadd.f32 %v553, %v554
    %v556 = vrot.slane %v555, 1
    %v557 = vadd.f32 %v555, %v556
    %v558 = vadd.f32 %v99, %v115
    %v559 = vrot.slane %v558, 4
    %v560 = vadd.f32 %v558, %v559
    %v561 = vrot.slane %v560, 2
    %v562 = vadd.f32 %v560, %v561
    %v563 = vrot.slane %v562, 1
    %v564 = vadd.f32 %v562, %v563
    %v565 = vmul.f32 %v459, %v404
    %v566 = vmul.f32 %v466, %v404
    %v567 = vmul.f32 %v473, %v404
    %v568 = vmul.f32 %v480, %v404
    %v569 = vmul.f32 %v487, %v404
    %v570 = vmul.f32 %v494, %v404
    %v571 = vmul.f32 %v501, %v404
    %v572 = vmul.f32 %v508, %v404
    %v573 = vmul.f32 %v515, %v404
    %v574 = vmul.f32 %v522, %v404
    %v575 = vmul.f32 %v529, %v404
    %v576 = vmul.f32 %v536, %v404
    %v577 = vmul.f32 %v543, %v404
    %v578 = vmul.f32 %v550, %v404
    %v579 = vmul.f32 %v557, %v404
    %v580 = vmul.f32 %v564, %v404
    %v581 = vsub.f32 %v84, %v565
    %v582 = vsub.f32 %v85, %v566
    %v583 = vsub.f32 %v86, %v567
    %v584 = vsub.f32 %v87, %v568
    %v585 = vsub.f32 %v88, %v569
    %v586 = vsub.f32 %v89, %v570
    %v587 = vsub.f32 %v90, %v571
    %v588 = vsub.f32 %v91, %v572
    %v589 = vsub.f32 %v92, %v573
    %v590 = vsub.f32 %v93, %v574
    %v591 = vsub.f32 %v94, %v575
    %v592 = vsub.f32 %v95, %v576
    %v593 = vsub.f32 %v96, %v577
    %v594 = vsub.f32 %v97, %v578
    %v595 = vsub.f32 %v98, %v579
    %v596 = vsub.f32 %v99, %v580
    %v597 = vsub.f32 %v100, %v565
    %v598 = vsub.f32 %v101, %v566
    %v599 = vsub.f32 %v102, %v567
    %v600 = vsub.f32 %v103, %v568
    %v601 = vsub.f32 %v104, %v569
    %v602 = vsub.f32 %v105, %v570
    %v603 = vsub.f32 %v106, %v571
    %v604 = vsub.f32 %v107, %v572
    %v605 = vsub.f32 %v108, %v573
    %v606 = vsub.f32 %v109, %v574
    %v607 = vsub.f32 %v110, %v575
    %v608 = vsub.f32 %v111, %v576
    %v609 = vsub.f32 %v112, %v577
    %v610 = vsub.f32 %v113, %v578
    %v611 = vsub.f32 %v114, %v579
    %v612 = vsub.f32 %v115, %v580
    %v613 = vmul.f32 %v421, %v421
    %v614 = vmul.f32 %v422, %v422
    %v615 = vmul.f32 %v423, %v423
    %v616 = vmul.f32 %v424, %v424
    %v617 = vmul.f32 %v425, %v425
    %v618 = vmul.f32 %v426, %v426
    %v619 = vmul.f32 %v427, %v427
    %v620 = vmul.f32 %v428, %v428
    %v621 = vmul.f32 %v429, %v429
    %v622 = vmul.f32 %v430, %v430
    %v623 = vmul.f32 %v431, %v431
    %v624 = vmul.f32 %v432, %v432
    %v625 = vmul.f32 %v433, %v433
    %v626 = vmul.f32 %v434, %v434
    %v627 = vmul.f32 %v435, %v435
    %v628 = vmul.f32 %v436, %v436
    %v629 = vmul.f32 %v437, %v437
    %v630 = vmul.f32 %v438, %v438
    %v631 = vmul.f32 %v439, %v439
    %v632 = vmul.f32 %v440, %v440
    %v633 = vmul.f32 %v441, %v441
    %v634 = vmul.f32 %v442, %v442
    %v635 = vmul.f32 %v443, %v443
    %v636 = vmul.f32 %v444, %v444
    %v637 = vmul.f32 %v445, %v445
    %v638 = vmul.f32 %v446, %v446
    %v639 = vmul.f32 %v447, %v447
    %v640 = vmul.f32 %v448, %v448
    %v641 = vmul.f32 %v449, %v449
    %v642 = vmul.f32 %v450, %v450
    %v643 = vmul.f32 %v451, %v451
    %v644 = vmul.f32 %v452, %v452
    %v645 = vadd.f32 %v613, %v629
    %v646 = vrot.slane %v645, 4
    %v647 = vadd.f32 %v645, %v646
    %v648 = vrot.slane %v647, 2
    %v649 = vadd.f32 %v647, %v648
    %v650 = vrot.slane %v649, 1
    %v651 = vadd.f32 %v649, %v650
    %v652 = vadd.f32 %v614, %v630
    %v653 = vrot.slane %v652, 4
    %v654 = vadd.f32 %v652, %v653
    %v655 = vrot.slane %v654, 2
    %v656 = vadd.f32 %v654, %v655
    %v657 = vrot.slane %v656, 1
    %v658 = vadd.f32 %v656, %v657
    %v659 = vadd.f32 %v615, %v631
    %v660 = vrot.slane %v659, 4
    %v661 = vadd.f32 %v659, %v660
    %v662 = vrot.slane %v661, 2
    %v663 = vadd.f32 %v661, %v662
    %v664 = vrot.slane %v663, 1
    %v665 = vadd.f32 %v663, %v664
    %v666 = vadd.f32 %v616, %v632
    %v667 = vrot.slane %v666, 4
    %v668 = vadd.f32 %v666, %v667
    %v669 = vrot.slane %v668, 2
    %v670 = vadd.f32 %v668, %v669
    %v671 = vrot.slane %v670, 1
    %v672 = vadd.f32 %v670, %v671
    %v673 = vadd.f32 %v617, %v633
    %v674 = vrot.slane %v673, 4
    %v675 = vadd.f32 %v673, %v674
    %v676 = vrot.slane %v675, 2
    %v677 = vadd.f32 %v675, %v676
    %v678 = vrot.slane %v677, 1
    %v679 = vadd.f32 %v677, %v678
    %v680 = vadd.f32 %v618, %v634
    %v681 = vrot.slane %v680, 4
    %v682 = vadd.f32 %v680, %v681
    %v683 = vrot.slane %v682, 2
    %v684 = vadd.f32 %v682, %v683
    %v685 = vrot.slane %v684, 1
    %v686 = vadd.f32 %v684, %v685
    %v687 = vadd.f32 %v619, %v635
    %v688 = vrot.slane %v687, 4
    %v689 = vadd.f32 %v687, %v688
    %v690 = vrot.slane %v689, 2
    %v691 = vadd.f32 %v689, %v690
    %v692 = vrot.slane %v691, 1
    %v693 = vadd.f32 %v691, %v692
    %v694 = vadd.f32 %v620, %v636
    %v695 = vrot.slane %v694, 4
    %v696 = vadd.f32 %v694, %v695
    %v697 = vrot.slane %v696, 2
    %v698 = vadd.f32 %v696, %v697
    %v699 = vrot.slane %v698, 1
    %v700 = vadd.f32 %v698, %v699
    %v701 = vadd.f32 %v621, %v637
    %v702 = vrot.slane %v701, 4
    %v703 = vadd.f32 %v701, %v702
    %v704 = vrot.slane %v703, 2
    %v705 = vadd.f32 %v703, %v704
    %v706 = vrot.slane %v705, 1
    %v707 = vadd.f32 %v705, %v706
    %v708 = vadd.f32 %v622, %v638
    %v709 = vrot.slane %v708, 4
    %v710 = vadd.f32 %v708, %v709
    %v711 = vrot.slane %v710, 2
    %v712 = vadd.f32 %v710, %v711
    %v713 = vrot.slane %v712, 1
    %v714 = vadd.f32 %v712, %v713
    %v715 = vadd.f32 %v623, %v639
    %v716 = vrot.slane %v715, 4
    %v717 = vadd.f32 %v715, %v716
    %v718 = vrot.slane %v717, 2
    %v719 = vadd.f32 %v717, %v718
    %v720 = vrot.slane %v719, 1
    %v721 = vadd.f32 %v719, %v720
    %v722 = vadd.f32 %v624, %v640
    %v723 = vrot.slane %v722, 4
    %v724 = vadd.f32 %v722, %v723
    %v725 = vrot.slane %v724, 2
    %v726 = vadd.f32 %v724, %v725
    %v727 = vrot.slane %v726, 1
    %v728 = vadd.f32 %v726, %v727
    %v729 = vadd.f32 %v625, %v641
    %v730 = vrot.slane %v729, 4
    %v731 = vadd.f32 %v729, %v730
    %v732 = vrot.slane %v731, 2
    %v733 = vadd.f32 %v731, %v732
    %v734 = vrot.slane %v733, 1
    %v735 = vadd.f32 %v733, %v734
    %v736 = vadd.f32 %v626, %v642
    %v737 = vrot.slane %v736, 4
    %v738 = vadd.f32 %v736, %v737
    %v739 = vrot.slane %v738, 2
    %v740 = vadd.f32 %v738, %v739
    %v741 = vrot.slane %v740, 1
    %v742 = vadd.f32 %v740, %v741
    %v743 = vadd.f32 %v627, %v643
    %v744 = vrot.slane %v743, 4
    %v745 = vadd.f32 %v743, %v744
    %v746 = vrot.slane %v745, 2
    %v747 = vadd.f32 %v745, %v746
    %v748 = vrot.slane %v747, 1
    %v749 = vadd.f32 %v747, %v748
    %v750 = vadd.f32 %v628, %v644
    %v751 = vrot.slane %v750, 4
    %v752 = vadd.f32 %v750, %v751
    %v753 = vrot.slane %v752, 2
    %v754 = vadd.f32 %v752, %v753
    %v755 = vrot.slane %v754, 1
    %v756 = vadd.f32 %v754, %v755
    %v757 = vmul.f32 %v581, %v581
    %v758 = vmul.f32 %v582, %v582
    %v759 = vmul.f32 %v583, %v583
    %v760 = vmul.f32 %v584, %v584
    %v761 = vmul.f32 %v585, %v585
    %v762 = vmul.f32 %v586, %v586
    %v763 = vmul.f32 %v587, %v587
    %v764 = vmul.f32 %v588, %v588
    %v765 = vmul.f32 %v589, %v589
    %v766 = vmul.f32 %v590, %v590
    %v767 = vmul.f32 %v591, %v591
    %v768 = vmul.f32 %v592, %v592
    %v769 = vmul.f32 %v593, %v593
    %v770 = vmul.f32 %v594, %v594
    %v771 = vmul.f32 %v595, %v595
    %v772 = vmul.f32 %v596, %v596
    %v773 = vmul.f32 %v597, %v597
    %v774 = vmul.f32 %v598, %v598
    %v775 = vmul.f32 %v599, %v599
    %v776 = vmul.f32 %v600, %v600
    %v777 = vmul.f32 %v601, %v601
    %v778 = vmul.f32 %v602, %v602
    %v779 = vmul.f32 %v603, %v603
    %v780 = vmul.f32 %v604, %v604
    %v781 = vmul.f32 %v605, %v605
    %v782 = vmul.f32 %v606, %v606
    %v783 = vmul.f32 %v607, %v607
    %v784 = vmul.f32 %v608, %v608
    %v785 = vmul.f32 %v609, %v609
    %v786 = vmul.f32 %v610, %v610
    %v787 = vmul.f32 %v611, %v611
    %v788 = vmul.f32 %v612, %v612
    %v789 = vadd.f32 %v757, %v773
    %v790 = vrot.slane %v789, 4
    %v791 = vadd.f32 %v789, %v790
    %v792 = vrot.slane %v791, 2
    %v793 = vadd.f32 %v791, %v792
    %v794 = vrot.slane %v793, 1
    %v795 = vadd.f32 %v793, %v794
    %v796 = vadd.f32 %v758, %v774
    %v797 = vrot.slane %v796, 4
    %v798 = vadd.f32 %v796, %v797
    %v799 = vrot.slane %v798, 2
    %v800 = vadd.f32 %v798, %v799
    %v801 = vrot.slane %v800, 1
    %v802 = vadd.f32 %v800, %v801
    %v803 = vadd.f32 %v759, %v775
    %v804 = vrot.slane %v803, 4
    %v805 = vadd.f32 %v803, %v804
    %v806 = vrot.slane %v805, 2
    %v807 = vadd.f32 %v805, %v806
    %v808 = vrot.slane %v807, 1
    %v809 = vadd.f32 %v807, %v808
    %v810 = vadd.f32 %v760, %v776
    %v811 = vrot.slane %v810, 4
    %v812 = vadd.f32 %v810, %v811
    %v813 = vrot.slane %v812, 2
    %v814 = vadd.f32 %v812, %v813
    %v815 = vrot.slane %v814, 1
    %v816 = vadd.f32 %v814, %v815
    %v817 = vadd.f32 %v761, %v777
    %v818 = vrot.slane %v817, 4
    %v819 = vadd.f32 %v817, %v818
    %v820 = vrot.slane %v819, 2
    %v821 = vadd.f32 %v819, %v820
    %v822 = vrot.slane %v821, 1
    %v823 = vadd.f32 %v821, %v822
    %v824 = vadd.f32 %v762, %v778
    %v825 = vrot.slane %v824, 4
    %v826 = vadd.f32 %v824, %v825
    %v827 = vrot.slane %v826, 2
    %v828 = vadd.f32 %v826, %v827
    %v829 = vrot.slane %v828, 1
    %v830 = vadd.f32 %v828, %v829
    %v831 = vadd.f32 %v763, %v779
    %v832 = vrot.slane %v831, 4
    %v833 = vadd.f32 %v831, %v832
    %v834 = vrot.slane %v833, 2
    %v835 = vadd.f32 %v833, %v834
    %v836 = vrot.slane %v835, 1
    %v837 = vadd.f32 %v835, %v836
    %v838 = vadd.f32 %v764, %v780
    %v839 = vrot.slane %v838, 4
    %v840 = vadd.f32 %v838, %v839
    %v841 = vrot.slane %v840, 2
    %v842 = vadd.f32 %v840, %v841
    %v843 = vrot.slane %v842, 1
    %v844 = vadd.f32 %v842, %v843
    %v845 = vadd.f32 %v765, %v781
    %v846 = vrot.slane %v845, 4
    %v847 = vadd.f32 %v845, %v846
    %v848 = vrot.slane %v847, 2
    %v849 = vadd.f32 %v847, %v848
    %v850 = vrot.slane %v849, 1
    %v851 = vadd.f32 %v849, %v850
    %v852 = vadd.f32 %v766, %v782
    %v853 = vrot.slane %v852, 4
    %v854 = vadd.f32 %v852, %v853
    %v855 = vrot.slane %v854, 2
    %v856 = vadd.f32 %v854, %v855
    %v857 = vrot.slane %v856, 1
    %v858 = vadd.f32 %v856, %v857
    %v859 = vadd.f32 %v767, %v783
    %v860 = vrot.slane %v859, 4
    %v861 = vadd.f32 %v859, %v860
    %v862 = vrot.slane %v861, 2
    %v863 = vadd.f32 %v861, %v862
    %v864 = vrot.slane %v863, 1
    %v865 = vadd.f32 %v863, %v864
    %v866 = vadd.f32 %v768, %v784
    %v867 = vrot.slane %v866, 4
    %v868 = vadd.f32 %v866, %v867
    %v869 = vrot.slane %v868, 2
    %v870 = vadd.f32 %v868, %v869
    %v871 = vrot.slane %v870, 1
    %v872 = vadd.f32 %v870, %v871
    %v873 = vadd.f32 %v769, %v785
    %v874 = vrot.slane %v873, 4
    %v875 = vadd.f32 %v873, %v874
    %v876 = vrot.slane %v875, 2
    %v877 = vadd.f32 %v875, %v876
    %v878 = vrot.slane %v877, 1
    %v879 = vadd.f32 %v877, %v878
    %v880 = vadd.f32 %v770, %v786
    %v881 = vrot.slane %v880, 4
    %v882 = vadd.f32 %v880, %v881
    %v883 = vrot.slane %v882, 2
    %v884 = vadd.f32 %v882, %v883
    %v885 = vrot.slane %v884, 1
    %v886 = vadd.f32 %v884, %v885
    %v887 = vadd.f32 %v771, %v787
    %v888 = vrot.slane %v887, 4
    %v889 = vadd.f32 %v887, %v888
    %v890 = vrot.slane %v889, 2
    %v891 = vadd.f32 %v889, %v890
    %v892 = vrot.slane %v891, 1
    %v893 = vadd.f32 %v891, %v892
    %v894 = vadd.f32 %v772, %v788
    %v895 = vrot.slane %v894, 4
    %v896 = vadd.f32 %v894, %v895
    %v897 = vrot.slane %v896, 2
    %v898 = vadd.f32 %v896, %v897
    %v899 = vrot.slane %v898, 1
    %v900 = vadd.f32 %v898, %v899
    %v901 = vmul.f32 %v651, 0.06666667
    %v902 = vmul.f32 %v658, 0.06666667
    %v903 = vmul.f32 %v665, 0.06666667
    %v904 = vmul.f32 %v672, 0.06666667
    %v905 = vmul.f32 %v679, 0.06666667
    %v906 = vmul.f32 %v686, 0.06666667
    %v907 = vmul.f32 %v693, 0.06666667
    %v908 = vmul.f32 %v700, 0.06666667
    %v909 = vmul.f32 %v707, 0.06666667
    %v910 = vmul.f32 %v714, 0.06666667
    %v911 = vmul.f32 %v721, 0.06666667
    %v912 = vmul.f32 %v728, 0.06666667
    %v913 = vmul.f32 %v735, 0.06666667
    %v914 = vmul.f32 %v742, 0.06666667
    %v915 = vmul.f32 %v749, 0.06666667
    %v916 = vmul.f32 %v756, 0.06666667
    %v917 = vadd.f32 %v901, 0.0001
    %v918 = vadd.f32 %v902, 0.0001
    %v919 = vadd.f32 %v903, 0.0001
    %v920 = vadd.f32 %v904, 0.0001
    %v921 = vadd.f32 %v905, 0.0001
    %v922 = vadd.f32 %v906, 0.0001
    %v923 = vadd.f32 %v907, 0.0001
    %v924 = vadd.f32 %v908, 0.0001
    %v925 = vadd.f32 %v909, 0.0001
    %v926 = vadd.f32 %v910, 0.0001
    %v927 = vadd.f32 %v911, 0.0001
    %v928 = vadd.f32 %v912, 0.0001
    %v929 = vadd.f32 %v913, 0.0001
    %v930 = vadd.f32 %v914, 0.0001
    %v931 = vadd.f32 %v915, 0.0001
    %v932 = vadd.f32 %v916, 0.0001
    %v933 = vsub.f32 1.0, %v917
    %v934 = vsub.f32 1.0, %v918
    %v935 = vsub.f32 1.0, %v919
    %v936 = vsub.f32 1.0, %v920
    %v937 = vsub.f32 1.0, %v921
    %v938 = vsub.f32 1.0, %v922
    %v939 = vsub.f32 1.0, %v923
    %v940 = vsub.f32 1.0, %v924
    %v941 = vsub.f32 1.0, %v925
    %v942 = vsub.f32 1.0, %v926
    %v943 = vsub.f32 1.0, %v927
    %v944 = vsub.f32 1.0, %v928
    %v945 = vsub.f32 1.0, %v929
    %v946 = vsub.f32 1.0, %v930
    %v947 = vsub.f32 1.0, %v931
    %v948 = vsub.f32 1.0, %v932
    %v949 = vmax.f32 %v933, 0.0
    %v950 = vmax.f32 %v934, 0.0
    %v951 = vmax.f32 %v935, 0.0
    %v952 = vmax.f32 %v936, 0.0
    %v953 = vmax.f32 %v937, 0.0
    %v954 = vmax.f32 %v938, 0.0
    %v955 = vmax.f32 %v939, 0.0
    %v956 = vmax.f32 %v940, 0.0
    %v957 = vmax.f32 %v941, 0.0
    %v958 = vmax.f32 %v942, 0.0
    %v959 = vmax.f32 %v943, 0.0
    %v960 = vmax.f32 %v944, 0.0
    %v961 = vmax.f32 %v945, 0.0
    %v962 = vmax.f32 %v946, 0.0
    %v963 = vmax.f32 %v947, 0.0
    %v964 = vmax.f32 %v948, 0.0
    %v965 = vmul.f32 %v795, 0.06666667
    %v966 = vmul.f32 %v802, 0.06666667
    %v967 = vmul.f32 %v809, 0.06666667
    %v968 = vmul.f32 %v816, 0.06666667
    %v969 = vmul.f32 %v823, 0.06666667
    %v970 = vmul.f32 %v830, 0.06666667
    %v971 = vmul.f32 %v837, 0.06666667
    %v972 = vmul.f32 %v844, 0.06666667
    %v973 = vmul.f32 %v851, 0.06666667
    %v974 = vmul.f32 %v858, 0.06666667
    %v975 = vmul.f32 %v865, 0.06666667
    %v976 = vmul.f32 %v872, 0.06666667
    %v977 = vmul.f32 %v879, 0.06666667
    %v978 = vmul.f32 %v886, 0.06666667
    %v979 = vmul.f32 %v893, 0.06666667
    %v980 = vmul.f32 %v900, 0.06666667
    %v981 = vadd.f32 %v965, 0.0001
    %v982 = vadd.f32 %v966, 0.0001
    %v983 = vadd.f32 %v967, 0.0001
    %v984 = vadd.f32 %v968, 0.0001
    %v985 = vadd.f32 %v969, 0.0001
    %v986 = vadd.f32 %v970, 0.0001
    %v987 = vadd.f32 %v971, 0.0001
    %v988 = vadd.f32 %v972, 0.0001
    %v989 = vadd.f32 %v973, 0.0001
    %v990 = vadd.f32 %v974, 0.0001
    %v991 = vadd.f32 %v975, 0.0001
    %v992 = vadd.f32 %v976, 0.0001
    %v993 = vadd.f32 %v977, 0.0001
    %v994 = vadd.f32 %v978, 0.0001
    %v995 = vadd.f32 %v979, 0.0001
    %v996 = vadd.f32 %v980, 0.0001
    %v997 = vsub.f32 1.0, %v981
    %v998 = vsub.f32 1.0, %v982
    %v999 = vsub.f32 1.0, %v983
    %v1000 = vsub.f32 1.0, %v984
    %v1001 = vsub.f32 1.0, %v985
    %v1002 = vsub.f32 1.0, %v986
    %v1003 = vsub.f32 1.0, %v987
    %v1004 = vsub.f32 1.0, %v988
    %v1005 = vsub.f32 1.0, %v989
    %v1006 = vsub.f32 1.0, %v990
    %v1007 = vsub.f32 1.0, %v991
    %v1008 = vsub.f32 1.0, %v992
    %v1009 = vsub.f32 1.0, %v993
    %v1010 = vsub.f32 1.0, %v994
    %v1011 = vsub.f32 1.0, %v995
    %v1012 = vsub.f32 1.0, %v996
    %v1013 = vmax.f32 %v997, 0.0
    %v1014 = vmax.f32 %v998, 0.0
    %v1015 = vmax.f32 %v999, 0.0
    %v1016 = vmax.f32 %v1000, 0.0
    %v1017 = vmax.f32 %v1001, 0.0
    %v1018 = vmax.f32 %v1002, 0.0
    %v1019 = vmax.f32 %v1003, 0.0
    %v1020 = vmax.f32 %v1004, 0.0
    %v1021 = vmax.f32 %v1005, 0.0
    %v1022 = vmax.f32 %v1006, 0.0
    %v1023 = vmax.f32 %v1007, 0.0
    %v1024 = vmax.f32 %v1008, 0.0
    %v1025 = vmax.f32 %v1009, 0.0
    %v1026 = vmax.f32 %v1010, 0.0
    %v1027 = vmax.f32 %v1011, 0.0
    %v1028 = vmax.f32 %v1012, 0.0
    %v1029 = vmul.f32 %v651, %v651
    %v1030 = vmul.f32 %v658, %v658
    %v1031 = vmul.f32 %v665, %v665
    %v1032 = vmul.f32 %v672, %v672
    %v1033 = vmul.f32 %v679, %v679
    %v1034 = vmul.f32 %v686, %v686
    %v1035 = vmul.f32 %v693, %v693
    %v1036 = vmul.f32 %v700, %v700
    %v1037 = vmul.f32 %v707, %v707
    %v1038 = vmul.f32 %v714, %v714
    %v1039 = vmul.f32 %v721, %v721
    %v1040 = vmul.f32 %v728, %v728
    %v1041 = vmul.f32 %v735, %v735
    %v1042 = vmul.f32 %v742, %v742
    %v1043 = vmul.f32 %v749, %v749
    %v1044 = vmul.f32 %v756, %v756
    %v1045 = vmul.f32 %v795, %v795
    %v1046 = vmul.f32 %v802, %v802
    %v1047 = vmul.f32 %v809, %v809
    %v1048 = vmul.f32 %v816, %v816
    %v1049 = vmul.f32 %v823, %v823
    %v1050 = vmul.f32 %v830, %v830
    %v1051 = vmul.f32 %v837, %v837
    %v1052 = vmul.f32 %v844, %v844
    %v1053 = vmul.f32 %v851, %v851
    %v1054 = vmul.f32 %v858, %v858
    %v1055 = vmul.f32 %v865, %v865
    %v1056 = vmul.f32 %v872, %v872
    %v1057 = vmul.f32 %v879, %v879
    %v1058 = vmul.f32 %v886, %v886
    %v1059 = vmul.f32 %v893, %v893
    %v1060 = vmul.f32 %v900, %v900
    %1061 = vmatprep.subr.mxu0 0.0
    %1062 = vmatpush1.xpose.msra.mxu0 0.0
    %1063 = vmatprep.subr.mxu0 0.0
    %1064 = vmatpush1.xpose.msra.mxu0 0.0
    %1065 = vmatprep.subr.mxu0 0.0
    %1066 = vmatpush1.xpose.msra.mxu0 0.0
    %1067 = vmatprep.subr.mxu0 0.0
    %1068 = vmatpush1.xpose.msra.mxu0 0.0
    %1069 = vmatprep.subr.mxu0 0.0
    %1070 = vmatpush1.xpose.msra.mxu0 0.0
    %1071 = vmatprep.subr.mxu0 0.0
    %1072 = vmatpush1.xpose.msra.mxu0 0.0
    %1073 = vmatprep.subr.mxu0 0.0
    %1074 = vmatpush1.xpose.msra.mxu0 0.0
    %1075 = vmatprep.subr.mxu0 0.0
    %1076 = vmatpush1.xpose.msra.mxu0 0.0
    %1077 = vmatprep.subr.mxu0 0.0
    %1078 = vmatpush1.xpose.msra.mxu0 0.0
    %1079 = vmatprep.subr.mxu0 0.0
    %1080 = vmatpush1.xpose.msra.mxu0 0.0
    %1081 = vmatprep.subr.mxu0 0.0
    %1082 = vmatpush1.xpose.msra.mxu0 0.0
    %1083 = vmatprep.subr.mxu0 0.0
    %1084 = vmatpush1.xpose.msra.mxu0 0.0
    %1085 = vmatprep.subr.mxu0 0.0
    %1086 = vmatpush1.xpose.msra.mxu0 0.0
    %1087 = vmatprep.subr.mxu0 0.0
    %1088 = vmatpush1.xpose.msra.mxu0 0.0
    %1089 = vmatprep.subr.mxu0 %v438
    %1090 = vmatpush1.xpose.msra.mxu0 %v437
    %1091 = vmatprep.subr.mxu0 %v422
    %1092 = vmatpush1.xpose.msra.mxu0 %v421
    %1093 = vmatprep.subr.mxu0 0.0
    %1094 = vmatpush2.xpose.msra.mxu0 0.0
    %1095 = vmatprep.subr.mxu0 0.0
    %1096 = vmatpush2.xpose.msra.mxu0 0.0
    %1097 = vmatprep.subr.mxu0 0.0
    %1098 = vmatpush2.xpose.msra.mxu0 0.0
    %1099 = vmatprep.subr.mxu0 0.0
    %1100 = vmatpush2.xpose.msra.mxu0 0.0
    %1101 = vmatprep.subr.mxu0 0.0
    %1102 = vmatpush2.xpose.msra.mxu0 0.0
    %1103 = vmatprep.subr.mxu0 0.0
    %1104 = vmatpush2.xpose.msra.mxu0 0.0
    %1105 = vmatprep.subr.mxu0 0.0
    %1106 = vmatpush2.xpose.msra.mxu0 0.0
    %1107 = vmatprep.subr.mxu0 0.0
    %1108 = vmatpush2.xpose.msra.mxu0 0.0
    %1109 = vmatprep.subr.mxu0 0.0
    %1110 = vmatpush2.xpose.msra.mxu0 0.0
    %1111 = vmatprep.subr.mxu0 0.0
    %1112 = vmatpush2.xpose.msra.mxu0 0.0
    %1113 = vmatprep.subr.mxu0 0.0
    %1114 = vmatpush2.xpose.msra.mxu0 0.0
    %1115 = vmatprep.subr.mxu0 0.0
    %1116 = vmatpush2.xpose.msra.mxu0 0.0
    %1117 = vmatprep.subr.mxu0 0.0
    %1118 = vmatpush2.xpose.msra.mxu0 0.0
    %1119 = vmatprep.subr.mxu0 0.0
    %1120 = vmatpush2.xpose.msra.mxu0 0.0
    %1121 = vmatprep.subr.mxu0 0.0
    %1122 = vmatpush2.xpose.msra.mxu0 0.0
    %1123 = vmatprep.subr.mxu0 0.0
    %1124 = vmatpush2.xpose.msra.mxu0 0.0
    %1125 = vmatprep.mubr.f32.mxu0 %v422
    %1126 = vmatmul.mubr.f32.gmra.mxu0 %v421
    %v1127 = vpop.f32.mrf.mxu0
    %v1128 = vadd.f32 0.0, %v1127
    %v1129 = vpop.f32.mrf.mxu0
    %1130 = vmatprep.mubr.f32.mxu0 %v438
    %1131 = vmatmul.mubr.f32.gmra.mxu0 %v437
    %v1132 = vpop.f32.mrf.mxu0
    %v1133 = vadd.f32 0.0, %v1132
    %v1134 = vpop.f32.mrf.mxu0
    %1135 = vdwg.mxu0
    %1136 = vmatprep.subr.mxu0 0.0
    %1137 = vmatpush1.xpose.msra.mxu0 0.0
    %1138 = vmatprep.subr.mxu0 0.0
    %1139 = vmatpush1.xpose.msra.mxu0 0.0
    %1140 = vmatprep.subr.mxu0 0.0
    %1141 = vmatpush1.xpose.msra.mxu0 0.0
    %1142 = vmatprep.subr.mxu0 0.0
    %1143 = vmatpush1.xpose.msra.mxu0 0.0
    %1144 = vmatprep.subr.mxu0 0.0
    %1145 = vmatpush1.xpose.msra.mxu0 0.0
    %1146 = vmatprep.subr.mxu0 0.0
    %1147 = vmatpush1.xpose.msra.mxu0 0.0
    %1148 = vmatprep.subr.mxu0 0.0
    %1149 = vmatpush1.xpose.msra.mxu0 0.0
    %1150 = vmatprep.subr.mxu0 0.0
    %1151 = vmatpush1.xpose.msra.mxu0 0.0
    %1152 = vmatprep.subr.mxu0 0.0
    %1153 = vmatpush1.xpose.msra.mxu0 0.0
    %1154 = vmatprep.subr.mxu0 0.0
    %1155 = vmatpush1.xpose.msra.mxu0 0.0
    %1156 = vmatprep.subr.mxu0 0.0
    %1157 = vmatpush1.xpose.msra.mxu0 0.0
    %1158 = vmatprep.subr.mxu0 0.0
    %1159 = vmatpush1.xpose.msra.mxu0 0.0
    %1160 = vmatprep.subr.mxu0 0.0
    %1161 = vmatpush1.xpose.msra.mxu0 0.0
    %1162 = vmatprep.subr.mxu0 0.0
    %1163 = vmatpush1.xpose.msra.mxu0 0.0
    %1164 = vmatprep.subr.mxu0 %v440
    %1165 = vmatpush1.xpose.msra.mxu0 %v439
    %1166 = vmatprep.subr.mxu0 %v424
    %1167 = vmatpush1.xpose.msra.mxu0 %v423
    %1168 = vmatprep.subr.mxu0 0.0
    %1169 = vmatpush2.xpose.msra.mxu0 0.0
    %1170 = vmatprep.subr.mxu0 0.0
    %1171 = vmatpush2.xpose.msra.mxu0 0.0
    %1172 = vmatprep.subr.mxu0 0.0
    %1173 = vmatpush2.xpose.msra.mxu0 0.0
    %1174 = vmatprep.subr.mxu0 0.0
    %1175 = vmatpush2.xpose.msra.mxu0 0.0
    %1176 = vmatprep.subr.mxu0 0.0
    %1177 = vmatpush2.xpose.msra.mxu0 0.0
    %1178 = vmatprep.subr.mxu0 0.0
    %1179 = vmatpush2.xpose.msra.mxu0 0.0
    %1180 = vmatprep.subr.mxu0 0.0
    %1181 = vmatpush2.xpose.msra.mxu0 0.0
    %1182 = vmatprep.subr.mxu0 0.0
    %1183 = vmatpush2.xpose.msra.mxu0 0.0
    %1184 = vmatprep.subr.mxu0 0.0
    %1185 = vmatpush2.xpose.msra.mxu0 0.0
    %1186 = vmatprep.subr.mxu0 0.0
    %1187 = vmatpush2.xpose.msra.mxu0 0.0
    %1188 = vmatprep.subr.mxu0 0.0
    %1189 = vmatpush2.xpose.msra.mxu0 0.0
    %1190 = vmatprep.subr.mxu0 0.0
    %1191 = vmatpush2.xpose.msra.mxu0 0.0
    %1192 = vmatprep.subr.mxu0 0.0
    %1193 = vmatpush2.xpose.msra.mxu0 0.0
    %1194 = vmatprep.subr.mxu0 0.0
    %1195 = vmatpush2.xpose.msra.mxu0 0.0
    %1196 = vmatprep.subr.mxu0 0.0
    %1197 = vmatpush2.xpose.msra.mxu0 0.0
    %1198 = vmatprep.subr.mxu0 0.0
    %1199 = vmatpush2.xpose.msra.mxu0 0.0
    %1200 = vmatprep.mubr.f32.mxu0 %v424
    %1201 = vmatmul.mubr.f32.gmra.mxu0 %v423
    %v1202 = vpop.f32.mrf.mxu0
    %v1203 = vadd.f32 %v1128, %v1202
    %v1204 = vpop.f32.mrf.mxu0
    %1205 = vmatprep.mubr.f32.mxu0 %v440
    %1206 = vmatmul.mubr.f32.gmra.mxu0 %v439
    %v1207 = vpop.f32.mrf.mxu0
    %v1208 = vadd.f32 %v1133, %v1207
    %v1209 = vpop.f32.mrf.mxu0
    %1210 = vdwg.mxu0
    %1211 = vmatprep.subr.mxu0 0.0
    %1212 = vmatpush1.xpose.msra.mxu0 0.0
    %1213 = vmatprep.subr.mxu0 0.0
    %1214 = vmatpush1.xpose.msra.mxu0 0.0
    %1215 = vmatprep.subr.mxu0 0.0
    %1216 = vmatpush1.xpose.msra.mxu0 0.0
    %1217 = vmatprep.subr.mxu0 0.0
    %1218 = vmatpush1.xpose.msra.mxu0 0.0
    %1219 = vmatprep.subr.mxu0 0.0
    %1220 = vmatpush1.xpose.msra.mxu0 0.0
    %1221 = vmatprep.subr.mxu0 0.0
    %1222 = vmatpush1.xpose.msra.mxu0 0.0
    %1223 = vmatprep.subr.mxu0 0.0
    %1224 = vmatpush1.xpose.msra.mxu0 0.0
    %1225 = vmatprep.subr.mxu0 0.0
    %1226 = vmatpush1.xpose.msra.mxu0 0.0
    %1227 = vmatprep.subr.mxu0 0.0
    %1228 = vmatpush1.xpose.msra.mxu0 0.0
    %1229 = vmatprep.subr.mxu0 0.0
    %1230 = vmatpush1.xpose.msra.mxu0 0.0
    %1231 = vmatprep.subr.mxu0 0.0
    %1232 = vmatpush1.xpose.msra.mxu0 0.0
    %1233 = vmatprep.subr.mxu0 0.0
    %1234 = vmatpush1.xpose.msra.mxu0 0.0
    %1235 = vmatprep.subr.mxu0 0.0
    %1236 = vmatpush1.xpose.msra.mxu0 0.0
    %1237 = vmatprep.subr.mxu0 0.0
    %1238 = vmatpush1.xpose.msra.mxu0 0.0
    %1239 = vmatprep.subr.mxu0 %v442
    %1240 = vmatpush1.xpose.msra.mxu0 %v441
    %1241 = vmatprep.subr.mxu0 %v426
    %1242 = vmatpush1.xpose.msra.mxu0 %v425
    %1243 = vmatprep.subr.mxu0 0.0
    %1244 = vmatpush2.xpose.msra.mxu0 0.0
    %1245 = vmatprep.subr.mxu0 0.0
    %1246 = vmatpush2.xpose.msra.mxu0 0.0
    %1247 = vmatprep.subr.mxu0 0.0
    %1248 = vmatpush2.xpose.msra.mxu0 0.0
    %1249 = vmatprep.subr.mxu0 0.0
    %1250 = vmatpush2.xpose.msra.mxu0 0.0
    %1251 = vmatprep.subr.mxu0 0.0
    %1252 = vmatpush2.xpose.msra.mxu0 0.0
    %1253 = vmatprep.subr.mxu0 0.0
    %1254 = vmatpush2.xpose.msra.mxu0 0.0
    %1255 = vmatprep.subr.mxu0 0.0
    %1256 = vmatpush2.xpose.msra.mxu0 0.0
    %1257 = vmatprep.subr.mxu0 0.0
    %1258 = vmatpush2.xpose.msra.mxu0 0.0
    %1259 = vmatprep.subr.mxu0 0.0
    %1260 = vmatpush2.xpose.msra.mxu0 0.0
    %1261 = vmatprep.subr.mxu0 0.0
    %1262 = vmatpush2.xpose.msra.mxu0 0.0
    %1263 = vmatprep.subr.mxu0 0.0
    %1264 = vmatpush2.xpose.msra.mxu0 0.0
    %1265 = vmatprep.subr.mxu0 0.0
    %1266 = vmatpush2.xpose.msra.mxu0 0.0
    %1267 = vmatprep.subr.mxu0 0.0
    %1268 = vmatpush2.xpose.msra.mxu0 0.0
    %1269 = vmatprep.subr.mxu0 0.0
    %1270 = vmatpush2.xpose.msra.mxu0 0.0
    %1271 = vmatprep.subr.mxu0 0.0
    %1272 = vmatpush2.xpose.msra.mxu0 0.0
    %1273 = vmatprep.subr.mxu0 0.0
    %1274 = vmatpush2.xpose.msra.mxu0 0.0
    %1275 = vmatprep.mubr.f32.mxu0 %v426
    %1276 = vmatmul.mubr.f32.gmra.mxu0 %v425
    %v1277 = vpop.f32.mrf.mxu0
    %v1278 = vadd.f32 %v1203, %v1277
    %v1279 = vpop.f32.mrf.mxu0
    %1280 = vmatprep.mubr.f32.mxu0 %v442
    %1281 = vmatmul.mubr.f32.gmra.mxu0 %v441
    %v1282 = vpop.f32.mrf.mxu0
    %v1283 = vadd.f32 %v1208, %v1282
    %v1284 = vpop.f32.mrf.mxu0
    %1285 = vdwg.mxu0
    %1286 = vmatprep.subr.mxu0 0.0
    %1287 = vmatpush1.xpose.msra.mxu0 0.0
    %1288 = vmatprep.subr.mxu0 0.0
    %1289 = vmatpush1.xpose.msra.mxu0 0.0
    %1290 = vmatprep.subr.mxu0 0.0
    %1291 = vmatpush1.xpose.msra.mxu0 0.0
    %1292 = vmatprep.subr.mxu0 0.0
    %1293 = vmatpush1.xpose.msra.mxu0 0.0
    %1294 = vmatprep.subr.mxu0 0.0
    %1295 = vmatpush1.xpose.msra.mxu0 0.0
    %1296 = vmatprep.subr.mxu0 0.0
    %1297 = vmatpush1.xpose.msra.mxu0 0.0
    %1298 = vmatprep.subr.mxu0 0.0
    %1299 = vmatpush1.xpose.msra.mxu0 0.0
    %1300 = vmatprep.subr.mxu0 0.0
    %1301 = vmatpush1.xpose.msra.mxu0 0.0
    %1302 = vmatprep.subr.mxu0 0.0
    %1303 = vmatpush1.xpose.msra.mxu0 0.0
    %1304 = vmatprep.subr.mxu0 0.0
    %1305 = vmatpush1.xpose.msra.mxu0 0.0
    %1306 = vmatprep.subr.mxu0 0.0
    %1307 = vmatpush1.xpose.msra.mxu0 0.0
    %1308 = vmatprep.subr.mxu0 0.0
    %1309 = vmatpush1.xpose.msra.mxu0 0.0
    %1310 = vmatprep.subr.mxu0 0.0
    %1311 = vmatpush1.xpose.msra.mxu0 0.0
    %1312 = vmatprep.subr.mxu0 0.0
    %1313 = vmatpush1.xpose.msra.mxu0 0.0
    %1314 = vmatprep.subr.mxu0 %v444
    %1315 = vmatpush1.xpose.msra.mxu0 %v443
    %1316 = vmatprep.subr.mxu0 %v428
    %1317 = vmatpush1.xpose.msra.mxu0 %v427
    %1318 = vmatprep.subr.mxu0 0.0
    %1319 = vmatpush2.xpose.msra.mxu0 0.0
    %1320 = vmatprep.subr.mxu0 0.0
    %1321 = vmatpush2.xpose.msra.mxu0 0.0
    %1322 = vmatprep.subr.mxu0 0.0
    %1323 = vmatpush2.xpose.msra.mxu0 0.0
    %1324 = vmatprep.subr.mxu0 0.0
    %1325 = vmatpush2.xpose.msra.mxu0 0.0
    %1326 = vmatprep.subr.mxu0 0.0
    %1327 = vmatpush2.xpose.msra.mxu0 0.0
    %1328 = vmatprep.subr.mxu0 0.0
    %1329 = vmatpush2.xpose.msra.mxu0 0.0
    %1330 = vmatprep.subr.mxu0 0.0
    %1331 = vmatpush2.xpose.msra.mxu0 0.0
    %1332 = vmatprep.subr.mxu0 0.0
    %1333 = vmatpush2.xpose.msra.mxu0 0.0
    %1334 = vmatprep.subr.mxu0 0.0
    %1335 = vmatpush2.xpose.msra.mxu0 0.0
    %1336 = vmatprep.subr.mxu0 0.0
    %1337 = vmatpush2.xpose.msra.mxu0 0.0
    %1338 = vmatprep.subr.mxu0 0.0
    %1339 = vmatpush2.xpose.msra.mxu0 0.0
    %1340 = vmatprep.subr.mxu0 0.0
    %1341 = vmatpush2.xpose.msra.mxu0 0.0
    %1342 = vmatprep.subr.mxu0 0.0
    %1343 = vmatpush2.xpose.msra.mxu0 0.0
    %1344 = vmatprep.subr.mxu0 0.0
    %1345 = vmatpush2.xpose.msra.mxu0 0.0
    %1346 = vmatprep.subr.mxu0 0.0
    %1347 = vmatpush2.xpose.msra.mxu0 0.0
    %1348 = vmatprep.subr.mxu0 0.0
    %1349 = vmatpush2.xpose.msra.mxu0 0.0
    %1350 = vmatprep.mubr.f32.mxu0 %v428
    %1351 = vmatmul.mubr.f32.gmra.mxu0 %v427
    %v1352 = vpop.f32.mrf.mxu0
    %v1353 = vadd.f32 %v1278, %v1352
    %v1354 = vpop.f32.mrf.mxu0
    %1355 = vmatprep.mubr.f32.mxu0 %v444
    %1356 = vmatmul.mubr.f32.gmra.mxu0 %v443
    %v1357 = vpop.f32.mrf.mxu0
    %v1358 = vadd.f32 %v1283, %v1357
    %v1359 = vpop.f32.mrf.mxu0
    %1360 = vdwg.mxu0
    %1361 = vmatprep.subr.mxu0 0.0
    %1362 = vmatpush1.xpose.msra.mxu0 0.0
    %1363 = vmatprep.subr.mxu0 0.0
    %1364 = vmatpush1.xpose.msra.mxu0 0.0
    %1365 = vmatprep.subr.mxu0 0.0
    %1366 = vmatpush1.xpose.msra.mxu0 0.0
    %1367 = vmatprep.subr.mxu0 0.0
    %1368 = vmatpush1.xpose.msra.mxu0 0.0
    %1369 = vmatprep.subr.mxu0 0.0
    %1370 = vmatpush1.xpose.msra.mxu0 0.0
    %1371 = vmatprep.subr.mxu0 0.0
    %1372 = vmatpush1.xpose.msra.mxu0 0.0
    %1373 = vmatprep.subr.mxu0 0.0
    %1374 = vmatpush1.xpose.msra.mxu0 0.0
    %1375 = vmatprep.subr.mxu0 0.0
    %1376 = vmatpush1.xpose.msra.mxu0 0.0
    %1377 = vmatprep.subr.mxu0 0.0
    %1378 = vmatpush1.xpose.msra.mxu0 0.0
    %1379 = vmatprep.subr.mxu0 0.0
    %1380 = vmatpush1.xpose.msra.mxu0 0.0
    %1381 = vmatprep.subr.mxu0 0.0
    %1382 = vmatpush1.xpose.msra.mxu0 0.0
    %1383 = vmatprep.subr.mxu0 0.0
    %1384 = vmatpush1.xpose.msra.mxu0 0.0
    %1385 = vmatprep.subr.mxu0 0.0
    %1386 = vmatpush1.xpose.msra.mxu0 0.0
    %1387 = vmatprep.subr.mxu0 0.0
    %1388 = vmatpush1.xpose.msra.mxu0 0.0
    %1389 = vmatprep.subr.mxu0 %v446
    %1390 = vmatpush1.xpose.msra.mxu0 %v445
    %1391 = vmatprep.subr.mxu0 %v430
    %1392 = vmatpush1.xpose.msra.mxu0 %v429
    %1393 = vmatprep.subr.mxu0 0.0
    %1394 = vmatpush2.xpose.msra.mxu0 0.0
    %1395 = vmatprep.subr.mxu0 0.0
    %1396 = vmatpush2.xpose.msra.mxu0 0.0
    %1397 = vmatprep.subr.mxu0 0.0
    %1398 = vmatpush2.xpose.msra.mxu0 0.0
    %1399 = vmatprep.subr.mxu0 0.0
    %1400 = vmatpush2.xpose.msra.mxu0 0.0
    %1401 = vmatprep.subr.mxu0 0.0
    %1402 = vmatpush2.xpose.msra.mxu0 0.0
    %1403 = vmatprep.subr.mxu0 0.0
    %1404 = vmatpush2.xpose.msra.mxu0 0.0
    %1405 = vmatprep.subr.mxu0 0.0
    %1406 = vmatpush2.xpose.msra.mxu0 0.0
    %1407 = vmatprep.subr.mxu0 0.0
    %1408 = vmatpush2.xpose.msra.mxu0 0.0
    %1409 = vmatprep.subr.mxu0 0.0
    %1410 = vmatpush2.xpose.msra.mxu0 0.0
    %1411 = vmatprep.subr.mxu0 0.0
    %1412 = vmatpush2.xpose.msra.mxu0 0.0
    %1413 = vmatprep.subr.mxu0 0.0
    %1414 = vmatpush2.xpose.msra.mxu0 0.0
    %1415 = vmatprep.subr.mxu0 0.0
    %1416 = vmatpush2.xpose.msra.mxu0 0.0
    %1417 = vmatprep.subr.mxu0 0.0
    %1418 = vmatpush2.xpose.msra.mxu0 0.0
    %1419 = vmatprep.subr.mxu0 0.0
    %1420 = vmatpush2.xpose.msra.mxu0 0.0
    %1421 = vmatprep.subr.mxu0 0.0
    %1422 = vmatpush2.xpose.msra.mxu0 0.0
    %1423 = vmatprep.subr.mxu0 0.0
    %1424 = vmatpush2.xpose.msra.mxu0 0.0
    %1425 = vmatprep.mubr.f32.mxu0 %v430
    %1426 = vmatmul.mubr.f32.gmra.mxu0 %v429
    %v1427 = vpop.f32.mrf.mxu0
    %v1428 = vadd.f32 %v1353, %v1427
    %v1429 = vpop.f32.mrf.mxu0
    %1430 = vmatprep.mubr.f32.mxu0 %v446
    %1431 = vmatmul.mubr.f32.gmra.mxu0 %v445
    %v1432 = vpop.f32.mrf.mxu0
    %v1433 = vadd.f32 %v1358, %v1432
    %v1434 = vpop.f32.mrf.mxu0
    %1435 = vdwg.mxu0
    %1436 = vmatprep.subr.mxu0 0.0
    %1437 = vmatpush1.xpose.msra.mxu0 0.0
    %1438 = vmatprep.subr.mxu0 0.0
    %1439 = vmatpush1.xpose.msra.mxu0 0.0
    %1440 = vmatprep.subr.mxu0 0.0
    %1441 = vmatpush1.xpose.msra.mxu0 0.0
    %1442 = vmatprep.subr.mxu0 0.0
    %1443 = vmatpush1.xpose.msra.mxu0 0.0
    %1444 = vmatprep.subr.mxu0 0.0
    %1445 = vmatpush1.xpose.msra.mxu0 0.0
    %1446 = vmatprep.subr.mxu0 0.0
    %1447 = vmatpush1.xpose.msra.mxu0 0.0
    %1448 = vmatprep.subr.mxu0 0.0
    %1449 = vmatpush1.xpose.msra.mxu0 0.0
    %1450 = vmatprep.subr.mxu0 0.0
    %1451 = vmatpush1.xpose.msra.mxu0 0.0
    %1452 = vmatprep.subr.mxu0 0.0
    %1453 = vmatpush1.xpose.msra.mxu0 0.0
    %1454 = vmatprep.subr.mxu0 0.0
    %1455 = vmatpush1.xpose.msra.mxu0 0.0
    %1456 = vmatprep.subr.mxu0 0.0
    %1457 = vmatpush1.xpose.msra.mxu0 0.0
    %1458 = vmatprep.subr.mxu0 0.0
    %1459 = vmatpush1.xpose.msra.mxu0 0.0
    %1460 = vmatprep.subr.mxu0 0.0
    %1461 = vmatpush1.xpose.msra.mxu0 0.0
    %1462 = vmatprep.subr.mxu0 0.0
    %1463 = vmatpush1.xpose.msra.mxu0 0.0
    %1464 = vmatprep.subr.mxu0 %v448
    %1465 = vmatpush1.xpose.msra.mxu0 %v447
    %1466 = vmatprep.subr.mxu0 %v432
    %1467 = vmatpush1.xpose.msra.mxu0 %v431
    %1468 = vmatprep.subr.mxu0 0.0
    %1469 = vmatpush2.xpose.msra.mxu0 0.0
    %1470 = vmatprep.subr.mxu0 0.0
    %1471 = vmatpush2.xpose.msra.mxu0 0.0
    %1472 = vmatprep.subr.mxu0 0.0
    %1473 = vmatpush2.xpose.msra.mxu0 0.0
    %1474 = vmatprep.subr.mxu0 0.0
    %1475 = vmatpush2.xpose.msra.mxu0 0.0
    %1476 = vmatprep.subr.mxu0 0.0
    %1477 = vmatpush2.xpose.msra.mxu0 0.0
    %1478 = vmatprep.subr.mxu0 0.0
    %1479 = vmatpush2.xpose.msra.mxu0 0.0
    %1480 = vmatprep.subr.mxu0 0.0
    %1481 = vmatpush2.xpose.msra.mxu0 0.0
    %1482 = vmatprep.subr.mxu0 0.0
    %1483 = vmatpush2.xpose.msra.mxu0 0.0
    %1484 = vmatprep.subr.mxu0 0.0
    %1485 = vmatpush2.xpose.msra.mxu0 0.0
    %1486 = vmatprep.subr.mxu0 0.0
    %1487 = vmatpush2.xpose.msra.mxu0 0.0
    %1488 = vmatprep.subr.mxu0 0.0
    %1489 = vmatpush2.xpose.msra.mxu0 0.0
    %1490 = vmatprep.subr.mxu0 0.0
    %1491 = vmatpush2.xpose.msra.mxu0 0.0
    %1492 = vmatprep.subr.mxu0 0.0
    %1493 = vmatpush2.xpose.msra.mxu0 0.0
    %1494 = vmatprep.subr.mxu0 0.0
    %1495 = vmatpush2.xpose.msra.mxu0 0.0
    %1496 = vmatprep.subr.mxu0 0.0
    %1497 = vmatpush2.xpose.msra.mxu0 0.0
    %1498 = vmatprep.subr.mxu0 0.0
    %1499 = vmatpush2.xpose.msra.mxu0 0.0
    %1500 = vmatprep.mubr.f32.mxu0 %v432
    %1501 = vmatmul.mubr.f32.gmra.mxu0 %v431
    %v1502 = vpop.f32.mrf.mxu0
    %v1503 = vadd.f32 %v1428, %v1502
    %v1504 = vpop.f32.mrf.mxu0
    %1505 = vmatprep.mubr.f32.mxu0 %v448
    %1506 = vmatmul.mubr.f32.gmra.mxu0 %v447
    %v1507 = vpop.f32.mrf.mxu0
    %v1508 = vadd.f32 %v1433, %v1507
    %v1509 = vpop.f32.mrf.mxu0
    %1510 = vdwg.mxu0
    %1511 = vmatprep.subr.mxu0 0.0
    %1512 = vmatpush1.xpose.msra.mxu0 0.0
    %1513 = vmatprep.subr.mxu0 0.0
    %1514 = vmatpush1.xpose.msra.mxu0 0.0
    %1515 = vmatprep.subr.mxu0 0.0
    %1516 = vmatpush1.xpose.msra.mxu0 0.0
    %1517 = vmatprep.subr.mxu0 0.0
    %1518 = vmatpush1.xpose.msra.mxu0 0.0
    %1519 = vmatprep.subr.mxu0 0.0
    %1520 = vmatpush1.xpose.msra.mxu0 0.0
    %1521 = vmatprep.subr.mxu0 0.0
    %1522 = vmatpush1.xpose.msra.mxu0 0.0
    %1523 = vmatprep.subr.mxu0 0.0
    %1524 = vmatpush1.xpose.msra.mxu0 0.0
    %1525 = vmatprep.subr.mxu0 0.0
    %1526 = vmatpush1.xpose.msra.mxu0 0.0
    %1527 = vmatprep.subr.mxu0 0.0
    %1528 = vmatpush1.xpose.msra.mxu0 0.0
    %1529 = vmatprep.subr.mxu0 0.0
    %1530 = vmatpush1.xpose.msra.mxu0 0.0
    %1531 = vmatprep.subr.mxu0 0.0
    %1532 = vmatpush1.xpose.msra.mxu0 0.0
    %1533 = vmatprep.subr.mxu0 0.0
    %1534 = vmatpush1.xpose.msra.mxu0 0.0
    %1535 = vmatprep.subr.mxu0 0.0
    %1536 = vmatpush1.xpose.msra.mxu0 0.0
    %1537 = vmatprep.subr.mxu0 0.0
    %1538 = vmatpush1.xpose.msra.mxu0 0.0
    %1539 = vmatprep.subr.mxu0 %v450
    %1540 = vmatpush1.xpose.msra.mxu0 %v449
    %1541 = vmatprep.subr.mxu0 %v434
    %1542 = vmatpush1.xpose.msra.mxu0 %v433
    %1543 = vmatprep.subr.mxu0 0.0
    %1544 = vmatpush2.xpose.msra.mxu0 0.0
    %1545 = vmatprep.subr.mxu0 0.0
    %1546 = vmatpush2.xpose.msra.mxu0 0.0
    %1547 = vmatprep.subr.mxu0 0.0
    %1548 = vmatpush2.xpose.msra.mxu0 0.0
    %1549 = vmatprep.subr.mxu0 0.0
    %1550 = vmatpush2.xpose.msra.mxu0 0.0
    %1551 = vmatprep.subr.mxu0 0.0
    %1552 = vmatpush2.xpose.msra.mxu0 0.0
    %1553 = vmatprep.subr.mxu0 0.0
    %1554 = vmatpush2.xpose.msra.mxu0 0.0
    %1555 = vmatprep.subr.mxu0 0.0
    %1556 = vmatpush2.xpose.msra.mxu0 0.0
    %1557 = vmatprep.subr.mxu0 0.0
    %1558 = vmatpush2.xpose.msra.mxu0 0.0
    %1559 = vmatprep.subr.mxu0 0.0
    %1560 = vmatpush2.xpose.msra.mxu0 0.0
    %1561 = vmatprep.subr.mxu0 0.0
    %1562 = vmatpush2.xpose.msra.mxu0 0.0
    %1563 = vmatprep.subr.mxu0 0.0
    %1564 = vmatpush2.xpose.msra.mxu0 0.0
    %1565 = vmatprep.subr.mxu0 0.0
    %1566 = vmatpush2.xpose.msra.mxu0 0.0
    %1567 = vmatprep.subr.mxu0 0.0
    %1568 = vmatpush2.xpose.msra.mxu0 0.0
    %1569 = vmatprep.subr.mxu0 0.0
    %1570 = vmatpush2.xpose.msra.mxu0 0.0
    %1571 = vmatprep.subr.mxu0 0.0
    %1572 = vmatpush2.xpose.msra.mxu0 0.0
    %1573 = vmatprep.subr.mxu0 0.0
    %1574 = vmatpush2.xpose.msra.mxu0 0.0
    %1575 = vmatprep.mubr.f32.mxu0 %v434
    %1576 = vmatmul.mubr.f32.gmra.mxu0 %v433
    %v1577 = vpop.f32.mrf.mxu0
    %v1578 = vadd.f32 %v1503, %v1577
    %v1579 = vpop.f32.mrf.mxu0
    %1580 = vmatprep.mubr.f32.mxu0 %v450
    %1581 = vmatmul.mubr.f32.gmra.mxu0 %v449
    %v1582 = vpop.f32.mrf.mxu0
    %v1583 = vadd.f32 %v1508, %v1582
    %v1584 = vpop.f32.mrf.mxu0
    %1585 = vdwg.mxu0
    %1586 = vmatprep.subr.mxu0 0.0
    %1587 = vmatpush1.xpose.msra.mxu0 0.0
    %1588 = vmatprep.subr.mxu0 0.0
    %1589 = vmatpush1.xpose.msra.mxu0 0.0
    %1590 = vmatprep.subr.mxu0 0.0
    %1591 = vmatpush1.xpose.msra.mxu0 0.0
    %1592 = vmatprep.subr.mxu0 0.0
    %1593 = vmatpush1.xpose.msra.mxu0 0.0
    %1594 = vmatprep.subr.mxu0 0.0
    %1595 = vmatpush1.xpose.msra.mxu0 0.0
    %1596 = vmatprep.subr.mxu0 0.0
    %1597 = vmatpush1.xpose.msra.mxu0 0.0
    %1598 = vmatprep.subr.mxu0 0.0
    %1599 = vmatpush1.xpose.msra.mxu0 0.0
    %1600 = vmatprep.subr.mxu0 0.0
    %1601 = vmatpush1.xpose.msra.mxu0 0.0
    %1602 = vmatprep.subr.mxu0 0.0
    %1603 = vmatpush1.xpose.msra.mxu0 0.0
    %1604 = vmatprep.subr.mxu0 0.0
    %1605 = vmatpush1.xpose.msra.mxu0 0.0
    %1606 = vmatprep.subr.mxu0 0.0
    %1607 = vmatpush1.xpose.msra.mxu0 0.0
    %1608 = vmatprep.subr.mxu0 0.0
    %1609 = vmatpush1.xpose.msra.mxu0 0.0
    %1610 = vmatprep.subr.mxu0 0.0
    %1611 = vmatpush1.xpose.msra.mxu0 0.0
    %1612 = vmatprep.subr.mxu0 0.0
    %1613 = vmatpush1.xpose.msra.mxu0 0.0
    %1614 = vmatprep.subr.mxu0 %v452
    %1615 = vmatpush1.xpose.msra.mxu0 %v451
    %1616 = vmatprep.subr.mxu0 %v436
    %1617 = vmatpush1.xpose.msra.mxu0 %v435
    %1618 = vmatprep.subr.mxu0 0.0
    %1619 = vmatpush2.xpose.msra.mxu0 0.0
    %1620 = vmatprep.subr.mxu0 0.0
    %1621 = vmatpush2.xpose.msra.mxu0 0.0
    %1622 = vmatprep.subr.mxu0 0.0
    %1623 = vmatpush2.xpose.msra.mxu0 0.0
    %1624 = vmatprep.subr.mxu0 0.0
    %1625 = vmatpush2.xpose.msra.mxu0 0.0
    %1626 = vmatprep.subr.mxu0 0.0
    %1627 = vmatpush2.xpose.msra.mxu0 0.0
    %1628 = vmatprep.subr.mxu0 0.0
    %1629 = vmatpush2.xpose.msra.mxu0 0.0
    %1630 = vmatprep.subr.mxu0 0.0
    %1631 = vmatpush2.xpose.msra.mxu0 0.0
    %1632 = vmatprep.subr.mxu0 0.0
    %1633 = vmatpush2.xpose.msra.mxu0 0.0
    %1634 = vmatprep.subr.mxu0 0.0
    %1635 = vmatpush2.xpose.msra.mxu0 0.0
    %1636 = vmatprep.subr.mxu0 0.0
    %1637 = vmatpush2.xpose.msra.mxu0 0.0
    %1638 = vmatprep.subr.mxu0 0.0
    %1639 = vmatpush2.xpose.msra.mxu0 0.0
    %1640 = vmatprep.subr.mxu0 0.0
    %1641 = vmatpush2.xpose.msra.mxu0 0.0
    %1642 = vmatprep.subr.mxu0 0.0
    %1643 = vmatpush2.xpose.msra.mxu0 0.0
    %1644 = vmatprep.subr.mxu0 0.0
    %1645 = vmatpush2.xpose.msra.mxu0 0.0
    %1646 = vmatprep.subr.mxu0 0.0
    %1647 = vmatpush2.xpose.msra.mxu0 0.0
    %1648 = vmatprep.subr.mxu0 0.0
    %1649 = vmatpush2.xpose.msra.mxu0 0.0
    %1650 = vmatprep.mubr.f32.mxu0 %v436
    %1651 = vmatmul.mubr.f32.gmra.mxu0 %v435
    %v1652 = vpop.f32.mrf.mxu0
    %v1653 = vadd.f32 %v1578, %v1652
    %v1654 = vpop.f32.mrf.mxu0
    %1655 = vmatprep.mubr.f32.mxu0 %v452
    %1656 = vmatmul.mubr.f32.gmra.mxu0 %v451
    %v1657 = vpop.f32.mrf.mxu0
    %v1658 = vadd.f32 %v1583, %v1657
    %v1659 = vpop.f32.mrf.mxu0
    %1660 = vdwg.mxu0
    %1661 = vmatprep.subr.mxu0 0.0
    %1662 = vmatpush1.xpose.msra.mxu0 0.0
    %1663 = vmatprep.subr.mxu0 0.0
    %1664 = vmatpush1.xpose.msra.mxu0 0.0
    %1665 = vmatprep.subr.mxu0 0.0
    %1666 = vmatpush1.xpose.msra.mxu0 0.0
    %1667 = vmatprep.subr.mxu0 0.0
    %1668 = vmatpush1.xpose.msra.mxu0 0.0
    %1669 = vmatprep.subr.mxu0 0.0
    %1670 = vmatpush1.xpose.msra.mxu0 0.0
    %1671 = vmatprep.subr.mxu0 0.0
    %1672 = vmatpush1.xpose.msra.mxu0 0.0
    %1673 = vmatprep.subr.mxu0 0.0
    %1674 = vmatpush1.xpose.msra.mxu0 0.0
    %1675 = vmatprep.subr.mxu0 0.0
    %1676 = vmatpush1.xpose.msra.mxu0 0.0
    %1677 = vmatprep.subr.mxu0 0.0
    %1678 = vmatpush1.xpose.msra.mxu0 0.0
    %1679 = vmatprep.subr.mxu0 0.0
    %1680 = vmatpush1.xpose.msra.mxu0 0.0
    %1681 = vmatprep.subr.mxu0 0.0
    %1682 = vmatpush1.xpose.msra.mxu0 0.0
    %1683 = vmatprep.subr.mxu0 0.0
    %1684 = vmatpush1.xpose.msra.mxu0 0.0
    %1685 = vmatprep.subr.mxu0 0.0
    %1686 = vmatpush1.xpose.msra.mxu0 0.0
    %1687 = vmatprep.subr.mxu0 0.0
    %1688 = vmatpush1.xpose.msra.mxu0 0.0
    %1689 = vmatprep.subr.mxu0 %v598
    %1690 = vmatpush1.xpose.msra.mxu0 %v597
    %1691 = vmatprep.subr.mxu0 %v582
    %1692 = vmatpush1.xpose.msra.mxu0 %v581
    %1693 = vmatprep.subr.mxu0 0.0
    %1694 = vmatpush2.xpose.msra.mxu0 0.0
    %1695 = vmatprep.subr.mxu0 0.0
    %1696 = vmatpush2.xpose.msra.mxu0 0.0
    %1697 = vmatprep.subr.mxu0 0.0
    %1698 = vmatpush2.xpose.msra.mxu0 0.0
    %1699 = vmatprep.subr.mxu0 0.0
    %1700 = vmatpush2.xpose.msra.mxu0 0.0
    %1701 = vmatprep.subr.mxu0 0.0
    %1702 = vmatpush2.xpose.msra.mxu0 0.0
    %1703 = vmatprep.subr.mxu0 0.0
    %1704 = vmatpush2.xpose.msra.mxu0 0.0
    %1705 = vmatprep.subr.mxu0 0.0
    %1706 = vmatpush2.xpose.msra.mxu0 0.0
    %1707 = vmatprep.subr.mxu0 0.0
    %1708 = vmatpush2.xpose.msra.mxu0 0.0
    %1709 = vmatprep.subr.mxu0 0.0
    %1710 = vmatpush2.xpose.msra.mxu0 0.0
    %1711 = vmatprep.subr.mxu0 0.0
    %1712 = vmatpush2.xpose.msra.mxu0 0.0
    %1713 = vmatprep.subr.mxu0 0.0
    %1714 = vmatpush2.xpose.msra.mxu0 0.0
    %1715 = vmatprep.subr.mxu0 0.0
    %1716 = vmatpush2.xpose.msra.mxu0 0.0
    %1717 = vmatprep.subr.mxu0 0.0
    %1718 = vmatpush2.xpose.msra.mxu0 0.0
    %1719 = vmatprep.subr.mxu0 0.0
    %1720 = vmatpush2.xpose.msra.mxu0 0.0
    %1721 = vmatprep.subr.mxu0 0.0
    %1722 = vmatpush2.xpose.msra.mxu0 0.0
    %1723 = vmatprep.subr.mxu0 0.0
    %1724 = vmatpush2.xpose.msra.mxu0 0.0
    %1725 = vmatprep.mubr.f32.mxu0 %v582
    %1726 = vmatmul.mubr.f32.gmra.mxu0 %v581
    %v1727 = vpop.f32.mrf.mxu0
    %v1728 = vadd.f32 0.0, %v1727
    %v1729 = vpop.f32.mrf.mxu0
    %1730 = vmatprep.mubr.f32.mxu0 %v598
    %1731 = vmatmul.mubr.f32.gmra.mxu0 %v597
    %v1732 = vpop.f32.mrf.mxu0
    %v1733 = vadd.f32 0.0, %v1732
    %v1734 = vpop.f32.mrf.mxu0
    %1735 = vdwg.mxu0
    %1736 = vmatprep.subr.mxu0 0.0
    %1737 = vmatpush1.xpose.msra.mxu0 0.0
    %1738 = vmatprep.subr.mxu0 0.0
    %1739 = vmatpush1.xpose.msra.mxu0 0.0
    %1740 = vmatprep.subr.mxu0 0.0
    %1741 = vmatpush1.xpose.msra.mxu0 0.0
    %1742 = vmatprep.subr.mxu0 0.0
    %1743 = vmatpush1.xpose.msra.mxu0 0.0
    %1744 = vmatprep.subr.mxu0 0.0
    %1745 = vmatpush1.xpose.msra.mxu0 0.0
    %1746 = vmatprep.subr.mxu0 0.0
    %1747 = vmatpush1.xpose.msra.mxu0 0.0
    %1748 = vmatprep.subr.mxu0 0.0
    %1749 = vmatpush1.xpose.msra.mxu0 0.0
    %1750 = vmatprep.subr.mxu0 0.0
    %1751 = vmatpush1.xpose.msra.mxu0 0.0
    %1752 = vmatprep.subr.mxu0 0.0
    %1753 = vmatpush1.xpose.msra.mxu0 0.0
    %1754 = vmatprep.subr.mxu0 0.0
    %1755 = vmatpush1.xpose.msra.mxu0 0.0
    %1756 = vmatprep.subr.mxu0 0.0
    %1757 = vmatpush1.xpose.msra.mxu0 0.0
    %1758 = vmatprep.subr.mxu0 0.0
    %1759 = vmatpush1.xpose.msra.mxu0 0.0
    %1760 = vmatprep.subr.mxu0 0.0
    %1761 = vmatpush1.xpose.msra.mxu0 0.0
    %1762 = vmatprep.subr.mxu0 0.0
    %1763 = vmatpush1.xpose.msra.mxu0 0.0
    %1764 = vmatprep.subr.mxu0 %v600
    %1765 = vmatpush1.xpose.msra.mxu0 %v599
    %1766 = vmatprep.subr.mxu0 %v584
    %1767 = vmatpush1.xpose.msra.mxu0 %v583
    %1768 = vmatprep.subr.mxu0 0.0
    %1769 = vmatpush2.xpose.msra.mxu0 0.0
    %1770 = vmatprep.subr.mxu0 0.0
    %1771 = vmatpush2.xpose.msra.mxu0 0.0
    %1772 = vmatprep.subr.mxu0 0.0
    %1773 = vmatpush2.xpose.msra.mxu0 0.0
    %1774 = vmatprep.subr.mxu0 0.0
    %1775 = vmatpush2.xpose.msra.mxu0 0.0
    %1776 = vmatprep.subr.mxu0 0.0
    %1777 = vmatpush2.xpose.msra.mxu0 0.0
    %1778 = vmatprep.subr.mxu0 0.0
    %1779 = vmatpush2.xpose.msra.mxu0 0.0
    %1780 = vmatprep.subr.mxu0 0.0
    %1781 = vmatpush2.xpose.msra.mxu0 0.0
    %1782 = vmatprep.subr.mxu0 0.0
    %1783 = vmatpush2.xpose.msra.mxu0 0.0
    %1784 = vmatprep.subr.mxu0 0.0
    %1785 = vmatpush2.xpose.msra.mxu0 0.0
    %1786 = vmatprep.subr.mxu0 0.0
    %1787 = vmatpush2.xpose.msra.mxu0 0.0
    %1788 = vmatprep.subr.mxu0 0.0
    %1789 = vmatpush2.xpose.msra.mxu0 0.0
    %1790 = vmatprep.subr.mxu0 0.0
    %1791 = vmatpush2.xpose.msra.mxu0 0.0
    %1792 = vmatprep.subr.mxu0 0.0
    %1793 = vmatpush2.xpose.msra.mxu0 0.0
    %1794 = vmatprep.subr.mxu0 0.0
    %1795 = vmatpush2.xpose.msra.mxu0 0.0
    %1796 = vmatprep.subr.mxu0 0.0
    %1797 = vmatpush2.xpose.msra.mxu0 0.0
    %1798 = vmatprep.subr.mxu0 0.0
    %1799 = vmatpush2.xpose.msra.mxu0 0.0
    %1800 = vmatprep.mubr.f32.mxu0 %v584
    %1801 = vmatmul.mubr.f32.gmra.mxu0 %v583
    %v1802 = vpop.f32.mrf.mxu0
    %v1803 = vadd.f32 %v1728, %v1802
    %v1804 = vpop.f32.mrf.mxu0
    %1805 = vmatprep.mubr.f32.mxu0 %v600
    %1806 = vmatmul.mubr.f32.gmra.mxu0 %v599
    %v1807 = vpop.f32.mrf.mxu0
    %v1808 = vadd.f32 %v1733, %v1807
    %v1809 = vpop.f32.mrf.mxu0
    %1810 = vdwg.mxu0
    %1811 = vmatprep.subr.mxu0 0.0
    %1812 = vmatpush1.xpose.msra.mxu0 0.0
    %1813 = vmatprep.subr.mxu0 0.0
    %1814 = vmatpush1.xpose.msra.mxu0 0.0
    %1815 = vmatprep.subr.mxu0 0.0
    %1816 = vmatpush1.xpose.msra.mxu0 0.0
    %1817 = vmatprep.subr.mxu0 0.0
    %1818 = vmatpush1.xpose.msra.mxu0 0.0
    %1819 = vmatprep.subr.mxu0 0.0
    %1820 = vmatpush1.xpose.msra.mxu0 0.0
    %1821 = vmatprep.subr.mxu0 0.0
    %1822 = vmatpush1.xpose.msra.mxu0 0.0
    %1823 = vmatprep.subr.mxu0 0.0
    %1824 = vmatpush1.xpose.msra.mxu0 0.0
    %1825 = vmatprep.subr.mxu0 0.0
    %1826 = vmatpush1.xpose.msra.mxu0 0.0
    %1827 = vmatprep.subr.mxu0 0.0
    %1828 = vmatpush1.xpose.msra.mxu0 0.0
    %1829 = vmatprep.subr.mxu0 0.0
    %1830 = vmatpush1.xpose.msra.mxu0 0.0
    %1831 = vmatprep.subr.mxu0 0.0
    %1832 = vmatpush1.xpose.msra.mxu0 0.0
    %1833 = vmatprep.subr.mxu0 0.0
    %1834 = vmatpush1.xpose.msra.mxu0 0.0
    %1835 = vmatprep.subr.mxu0 0.0
    %1836 = vmatpush1.xpose.msra.mxu0 0.0
    %1837 = vmatprep.subr.mxu0 0.0
    %1838 = vmatpush1.xpose.msra.mxu0 0.0
    %1839 = vmatprep.subr.mxu0 %v602
    %1840 = vmatpush1.xpose.msra.mxu0 %v601
    %1841 = vmatprep.subr.mxu0 %v586
    %1842 = vmatpush1.xpose.msra.mxu0 %v585
    %1843 = vmatprep.subr.mxu0 0.0
    %1844 = vmatpush2.xpose.msra.mxu0 0.0
    %1845 = vmatprep.subr.mxu0 0.0
    %1846 = vmatpush2.xpose.msra.mxu0 0.0
    %1847 = vmatprep.subr.mxu0 0.0
    %1848 = vmatpush2.xpose.msra.mxu0 0.0
    %1849 = vmatprep.subr.mxu0 0.0
    %1850 = vmatpush2.xpose.msra.mxu0 0.0
    %1851 = vmatprep.subr.mxu0 0.0
    %1852 = vmatpush2.xpose.msra.mxu0 0.0
    %1853 = vmatprep.subr.mxu0 0.0
    %1854 = vmatpush2.xpose.msra.mxu0 0.0
    %1855 = vmatprep.subr.mxu0 0.0
    %1856 = vmatpush2.xpose.msra.mxu0 0.0
    %1857 = vmatprep.subr.mxu0 0.0
    %1858 = vmatpush2.xpose.msra.mxu0 0.0
    %1859 = vmatprep.subr.mxu0 0.0
    %1860 = vmatpush2.xpose.msra.mxu0 0.0
    %1861 = vmatprep.subr.mxu0 0.0
    %1862 = vmatpush2.xpose.msra.mxu0 0.0
    %1863 = vmatprep.subr.mxu0 0.0
    %1864 = vmatpush2.xpose.msra.mxu0 0.0
    %1865 = vmatprep.subr.mxu0 0.0
    %1866 = vmatpush2.xpose.msra.mxu0 0.0
    %1867 = vmatprep.subr.mxu0 0.0
    %1868 = vmatpush2.xpose.msra.mxu0 0.0
    %1869 = vmatprep.subr.mxu0 0.0
    %1870 = vmatpush2.xpose.msra.mxu0 0.0
    %1871 = vmatprep.subr.mxu0 0.0
    %1872 = vmatpush2.xpose.msra.mxu0 0.0
    %1873 = vmatprep.subr.mxu0 0.0
    %1874 = vmatpush2.xpose.msra.mxu0 0.0
    %1875 = vmatprep.mubr.f32.mxu0 %v586
    %1876 = vmatmul.mubr.f32.gmra.mxu0 %v585
    %v1877 = vpop.f32.mrf.mxu0
    %v1878 = vadd.f32 %v1803, %v1877
    %v1879 = vpop.f32.mrf.mxu0
    %1880 = vmatprep.mubr.f32.mxu0 %v602
    %1881 = vmatmul.mubr.f32.gmra.mxu0 %v601
    %v1882 = vpop.f32.mrf.mxu0
    %v1883 = vadd.f32 %v1808, %v1882
    %v1884 = vpop.f32.mrf.mxu0
    %1885 = vdwg.mxu0
    %1886 = vmatprep.subr.mxu0 0.0
    %1887 = vmatpush1.xpose.msra.mxu0 0.0
    %1888 = vmatprep.subr.mxu0 0.0
    %1889 = vmatpush1.xpose.msra.mxu0 0.0
    %1890 = vmatprep.subr.mxu0 0.0
    %1891 = vmatpush1.xpose.msra.mxu0 0.0
    %1892 = vmatprep.subr.mxu0 0.0
    %1893 = vmatpush1.xpose.msra.mxu0 0.0
    %1894 = vmatprep.subr.mxu0 0.0
    %1895 = vmatpush1.xpose.msra.mxu0 0.0
    %1896 = vmatprep.subr.mxu0 0.0
    %1897 = vmatpush1.xpose.msra.mxu0 0.0
    %1898 = vmatprep.subr.mxu0 0.0
    %1899 = vmatpush1.xpose.msra.mxu0 0.0
    %1900 = vmatprep.subr.mxu0 0.0
    %1901 = vmatpush1.xpose.msra.mxu0 0.0
    %1902 = vmatprep.subr.mxu0 0.0
    %1903 = vmatpush1.xpose.msra.mxu0 0.0
    %1904 = vmatprep.subr.mxu0 0.0
    %1905 = vmatpush1.xpose.msra.mxu0 0.0
    %1906 = vmatprep.subr.mxu0 0.0
    %1907 = vmatpush1.xpose.msra.mxu0 0.0
    %1908 = vmatprep.subr.mxu0 0.0
    %1909 = vmatpush1.xpose.msra.mxu0 0.0
    %1910 = vmatprep.subr.mxu0 0.0
    %1911 = vmatpush1.xpose.msra.mxu0 0.0
    %1912 = vmatprep.subr.mxu0 0.0
    %1913 = vmatpush1.xpose.msra.mxu0 0.0
    %1914 = vmatprep.subr.mxu0 %v604
    %1915 = vmatpush1.xpose.msra.mxu0 %v603
    %1916 = vmatprep.subr.mxu0 %v588
    %1917 = vmatpush1.xpose.msra.mxu0 %v587
    %1918 = vmatprep.subr.mxu0 0.0
    %1919 = vmatpush2.xpose.msra.mxu0 0.0
    %1920 = vmatprep.subr.mxu0 0.0
    %1921 = vmatpush2.xpose.msra.mxu0 0.0
    %1922 = vmatprep.subr.mxu0 0.0
    %1923 = vmatpush2.xpose.msra.mxu0 0.0
    %1924 = vmatprep.subr.mxu0 0.0
    %1925 = vmatpush2.xpose.msra.mxu0 0.0
    %1926 = vmatprep.subr.mxu0 0.0
    %1927 = vmatpush2.xpose.msra.mxu0 0.0
    %1928 = vmatprep.subr.mxu0 0.0
    %1929 = vmatpush2.xpose.msra.mxu0 0.0
    %1930 = vmatprep.subr.mxu0 0.0
    %1931 = vmatpush2.xpose.msra.mxu0 0.0
    %1932 = vmatprep.subr.mxu0 0.0
    %1933 = vmatpush2.xpose.msra.mxu0 0.0
    %1934 = vmatprep.subr.mxu0 0.0
    %1935 = vmatpush2.xpose.msra.mxu0 0.0
    %1936 = vmatprep.subr.mxu0 0.0
    %1937 = vmatpush2.xpose.msra.mxu0 0.0
    %1938 = vmatprep.subr.mxu0 0.0
    %1939 = vmatpush2.xpose.msra.mxu0 0.0
    %1940 = vmatprep.subr.mxu0 0.0
    %1941 = vmatpush2.xpose.msra.mxu0 0.0
    %1942 = vmatprep.subr.mxu0 0.0
    %1943 = vmatpush2.xpose.msra.mxu0 0.0
    %1944 = vmatprep.subr.mxu0 0.0
    %1945 = vmatpush2.xpose.msra.mxu0 0.0
    %1946 = vmatprep.subr.mxu0 0.0
    %1947 = vmatpush2.xpose.msra.mxu0 0.0
    %1948 = vmatprep.subr.mxu0 0.0
    %1949 = vmatpush2.xpose.msra.mxu0 0.0
    %1950 = vmatprep.mubr.f32.mxu0 %v588
    %1951 = vmatmul.mubr.f32.gmra.mxu0 %v587
    %v1952 = vpop.f32.mrf.mxu0
    %v1953 = vadd.f32 %v1878, %v1952
    %v1954 = vpop.f32.mrf.mxu0
    %1955 = vmatprep.mubr.f32.mxu0 %v604
    %1956 = vmatmul.mubr.f32.gmra.mxu0 %v603
    %v1957 = vpop.f32.mrf.mxu0
    %v1958 = vadd.f32 %v1883, %v1957
    %v1959 = vpop.f32.mrf.mxu0
    %1960 = vdwg.mxu0
    %1961 = vmatprep.subr.mxu0 0.0
    %1962 = vmatpush1.xpose.msra.mxu0 0.0
    %1963 = vmatprep.subr.mxu0 0.0
    %1964 = vmatpush1.xpose.msra.mxu0 0.0
    %1965 = vmatprep.subr.mxu0 0.0
    %1966 = vmatpush1.xpose.msra.mxu0 0.0
    %1967 = vmatprep.subr.mxu0 0.0
    %1968 = vmatpush1.xpose.msra.mxu0 0.0
    %1969 = vmatprep.subr.mxu0 0.0
    %1970 = vmatpush1.xpose.msra.mxu0 0.0
    %1971 = vmatprep.subr.mxu0 0.0
    %1972 = vmatpush1.xpose.msra.mxu0 0.0
    %1973 = vmatprep.subr.mxu0 0.0
    %1974 = vmatpush1.xpose.msra.mxu0 0.0
    %1975 = vmatprep.subr.mxu0 0.0
    %1976 = vmatpush1.xpose.msra.mxu0 0.0
    %1977 = vmatprep.subr.mxu0 0.0
    %1978 = vmatpush1.xpose.msra.mxu0 0.0
    %1979 = vmatprep.subr.mxu0 0.0
    %1980 = vmatpush1.xpose.msra.mxu0 0.0
    %1981 = vmatprep.subr.mxu0 0.0
    %1982 = vmatpush1.xpose.msra.mxu0 0.0
    %1983 = vmatprep.subr.mxu0 0.0
    %1984 = vmatpush1.xpose.msra.mxu0 0.0
    %1985 = vmatprep.subr.mxu0 0.0
    %1986 = vmatpush1.xpose.msra.mxu0 0.0
    %1987 = vmatprep.subr.mxu0 0.0
    %1988 = vmatpush1.xpose.msra.mxu0 0.0
    %1989 = vmatprep.subr.mxu0 %v606
    %1990 = vmatpush1.xpose.msra.mxu0 %v605
    %1991 = vmatprep.subr.mxu0 %v590
    %1992 = vmatpush1.xpose.msra.mxu0 %v589
    %1993 = vmatprep.subr.mxu0 0.0
    %1994 = vmatpush2.xpose.msra.mxu0 0.0
    %1995 = vmatprep.subr.mxu0 0.0
    %1996 = vmatpush2.xpose.msra.mxu0 0.0
    %1997 = vmatprep.subr.mxu0 0.0
    %1998 = vmatpush2.xpose.msra.mxu0 0.0
    %1999 = vmatprep.subr.mxu0 0.0
    %2000 = vmatpush2.xpose.msra.mxu0 0.0
    %2001 = vmatprep.subr.mxu0 0.0
    %2002 = vmatpush2.xpose.msra.mxu0 0.0
    %2003 = vmatprep.subr.mxu0 0.0
    %2004 = vmatpush2.xpose.msra.mxu0 0.0
    %2005 = vmatprep.subr.mxu0 0.0
    %2006 = vmatpush2.xpose.msra.mxu0 0.0
    %2007 = vmatprep.subr.mxu0 0.0
    %2008 = vmatpush2.xpose.msra.mxu0 0.0
    %2009 = vmatprep.subr.mxu0 0.0
    %2010 = vmatpush2.xpose.msra.mxu0 0.0
    %2011 = vmatprep.subr.mxu0 0.0
    %2012 = vmatpush2.xpose.msra.mxu0 0.0
    %2013 = vmatprep.subr.mxu0 0.0
    %2014 = vmatpush2.xpose.msra.mxu0 0.0
    %2015 = vmatprep.subr.mxu0 0.0
    %2016 = vmatpush2.xpose.msra.mxu0 0.0
    %2017 = vmatprep.subr.mxu0 0.0
    %2018 = vmatpush2.xpose.msra.mxu0 0.0
    %2019 = vmatprep.subr.mxu0 0.0
    %2020 = vmatpush2.xpose.msra.mxu0 0.0
    %2021 = vmatprep.subr.mxu0 0.0
    %2022 = vmatpush2.xpose.msra.mxu0 0.0
    %2023 = vmatprep.subr.mxu0 0.0
    %2024 = vmatpush2.xpose.msra.mxu0 0.0
    %2025 = vmatprep.mubr.f32.mxu0 %v590
    %2026 = vmatmul.mubr.f32.gmra.mxu0 %v589
    %v2027 = vpop.f32.mrf.mxu0
    %v2028 = vadd.f32 %v1953, %v2027
    %v2029 = vpop.f32.mrf.mxu0
    %2030 = vmatprep.mubr.f32.mxu0 %v606
    %2031 = vmatmul.mubr.f32.gmra.mxu0 %v605
    %v2032 = vpop.f32.mrf.mxu0
    %v2033 = vadd.f32 %v1958, %v2032
    %v2034 = vpop.f32.mrf.mxu0
    %2035 = vdwg.mxu0
    %2036 = vmatprep.subr.mxu0 0.0
    %2037 = vmatpush1.xpose.msra.mxu0 0.0
    %2038 = vmatprep.subr.mxu0 0.0
    %2039 = vmatpush1.xpose.msra.mxu0 0.0
    %2040 = vmatprep.subr.mxu0 0.0
    %2041 = vmatpush1.xpose.msra.mxu0 0.0
    %2042 = vmatprep.subr.mxu0 0.0
    %2043 = vmatpush1.xpose.msra.mxu0 0.0
    %2044 = vmatprep.subr.mxu0 0.0
    %2045 = vmatpush1.xpose.msra.mxu0 0.0
    %2046 = vmatprep.subr.mxu0 0.0
    %2047 = vmatpush1.xpose.msra.mxu0 0.0
    %2048 = vmatprep.subr.mxu0 0.0
    %2049 = vmatpush1.xpose.msra.mxu0 0.0
    %2050 = vmatprep.subr.mxu0 0.0
    %2051 = vmatpush1.xpose.msra.mxu0 0.0
    %2052 = vmatprep.subr.mxu0 0.0
    %2053 = vmatpush1.xpose.msra.mxu0 0.0
    %2054 = vmatprep.subr.mxu0 0.0
    %2055 = vmatpush1.xpose.msra.mxu0 0.0
    %2056 = vmatprep.subr.mxu0 0.0
    %2057 = vmatpush1.xpose.msra.mxu0 0.0
    %2058 = vmatprep.subr.mxu0 0.0
    %2059 = vmatpush1.xpose.msra.mxu0 0.0
    %2060 = vmatprep.subr.mxu0 0.0
    %2061 = vmatpush1.xpose.msra.mxu0 0.0
    %2062 = vmatprep.subr.mxu0 0.0
    %2063 = vmatpush1.xpose.msra.mxu0 0.0
    %2064 = vmatprep.subr.mxu0 %v608
    %2065 = vmatpush1.xpose.msra.mxu0 %v607
    %2066 = vmatprep.subr.mxu0 %v592
    %2067 = vmatpush1.xpose.msra.mxu0 %v591
    %2068 = vmatprep.subr.mxu0 0.0
    %2069 = vmatpush2.xpose.msra.mxu0 0.0
    %2070 = vmatprep.subr.mxu0 0.0
    %2071 = vmatpush2.xpose.msra.mxu0 0.0
    %2072 = vmatprep.subr.mxu0 0.0
    %2073 = vmatpush2.xpose.msra.mxu0 0.0
    %2074 = vmatprep.subr.mxu0 0.0
    %2075 = vmatpush2.xpose.msra.mxu0 0.0
    %2076 = vmatprep.subr.mxu0 0.0
    %2077 = vmatpush2.xpose.msra.mxu0 0.0
    %2078 = vmatprep.subr.mxu0 0.0
    %2079 = vmatpush2.xpose.msra.mxu0 0.0
    %2080 = vmatprep.subr.mxu0 0.0
    %2081 = vmatpush2.xpose.msra.mxu0 0.0
    %2082 = vmatprep.subr.mxu0 0.0
    %2083 = vmatpush2.xpose.msra.mxu0 0.0
    %2084 = vmatprep.subr.mxu0 0.0
    %2085 = vmatpush2.xpose.msra.mxu0 0.0
    %2086 = vmatprep.subr.mxu0 0.0
    %2087 = vmatpush2.xpose.msra.mxu0 0.0
    %2088 = vmatprep.subr.mxu0 0.0
    %2089 = vmatpush2.xpose.msra.mxu0 0.0
    %2090 = vmatprep.subr.mxu0 0.0
    %2091 = vmatpush2.xpose.msra.mxu0 0.0
    %2092 = vmatprep.subr.mxu0 0.0
    %2093 = vmatpush2.xpose.msra.mxu0 0.0
    %2094 = vmatprep.subr.mxu0 0.0
    %2095 = vmatpush2.xpose.msra.mxu0 0.0
    %2096 = vmatprep.subr.mxu0 0.0
    %2097 = vmatpush2.xpose.msra.mxu0 0.0
    %2098 = vmatprep.subr.mxu0 0.0
    %2099 = vmatpush2.xpose.msra.mxu0 0.0
    %2100 = vmatprep.mubr.f32.mxu0 %v592
    %2101 = vmatmul.mubr.f32.gmra.mxu0 %v591
    %v2102 = vpop.f32.mrf.mxu0
    %v2103 = vadd.f32 %v2028, %v2102
    %v2104 = vpop.f32.mrf.mxu0
    %2105 = vmatprep.mubr.f32.mxu0 %v608
    %2106 = vmatmul.mubr.f32.gmra.mxu0 %v607
    %v2107 = vpop.f32.mrf.mxu0
    %v2108 = vadd.f32 %v2033, %v2107
    %v2109 = vpop.f32.mrf.mxu0
    %2110 = vdwg.mxu0
    %2111 = vmatprep.subr.mxu0 0.0
    %2112 = vmatpush1.xpose.msra.mxu0 0.0
    %2113 = vmatprep.subr.mxu0 0.0
    %2114 = vmatpush1.xpose.msra.mxu0 0.0
    %2115 = vmatprep.subr.mxu0 0.0
    %2116 = vmatpush1.xpose.msra.mxu0 0.0
    %2117 = vmatprep.subr.mxu0 0.0
    %2118 = vmatpush1.xpose.msra.mxu0 0.0
    %2119 = vmatprep.subr.mxu0 0.0
    %2120 = vmatpush1.xpose.msra.mxu0 0.0
    %2121 = vmatprep.subr.mxu0 0.0
    %2122 = vmatpush1.xpose.msra.mxu0 0.0
    %2123 = vmatprep.subr.mxu0 0.0
    %2124 = vmatpush1.xpose.msra.mxu0 0.0
    %2125 = vmatprep.subr.mxu0 0.0
    %2126 = vmatpush1.xpose.msra.mxu0 0.0
    %2127 = vmatprep.subr.mxu0 0.0
    %2128 = vmatpush1.xpose.msra.mxu0 0.0
    %2129 = vmatprep.subr.mxu0 0.0
    %2130 = vmatpush1.xpose.msra.mxu0 0.0
    %2131 = vmatprep.subr.mxu0 0.0
    %2132 = vmatpush1.xpose.msra.mxu0 0.0
    %2133 = vmatprep.subr.mxu0 0.0
    %2134 = vmatpush1.xpose.msra.mxu0 0.0
    %2135 = vmatprep.subr.mxu0 0.0
    %2136 = vmatpush1.xpose.msra.mxu0 0.0
    %2137 = vmatprep.subr.mxu0 0.0
    %2138 = vmatpush1.xpose.msra.mxu0 0.0
    %2139 = vmatprep.subr.mxu0 %v610
    %2140 = vmatpush1.xpose.msra.mxu0 %v609
    %2141 = vmatprep.subr.mxu0 %v594
    %2142 = vmatpush1.xpose.msra.mxu0 %v593
    %2143 = vmatprep.subr.mxu0 0.0
    %2144 = vmatpush2.xpose.msra.mxu0 0.0
    %2145 = vmatprep.subr.mxu0 0.0
    %2146 = vmatpush2.xpose.msra.mxu0 0.0
    %2147 = vmatprep.subr.mxu0 0.0
    %2148 = vmatpush2.xpose.msra.mxu0 0.0
    %2149 = vmatprep.subr.mxu0 0.0
    %2150 = vmatpush2.xpose.msra.mxu0 0.0
    %2151 = vmatprep.subr.mxu0 0.0
    %2152 = vmatpush2.xpose.msra.mxu0 0.0
    %2153 = vmatprep.subr.mxu0 0.0
    %2154 = vmatpush2.xpose.msra.mxu0 0.0
    %2155 = vmatprep.subr.mxu0 0.0
    %2156 = vmatpush2.xpose.msra.mxu0 0.0
    %2157 = vmatprep.subr.mxu0 0.0
    %2158 = vmatpush2.xpose.msra.mxu0 0.0
    %2159 = vmatprep.subr.mxu0 0.0
    %2160 = vmatpush2.xpose.msra.mxu0 0.0
    %2161 = vmatprep.subr.mxu0 0.0
    %2162 = vmatpush2.xpose.msra.mxu0 0.0
    %2163 = vmatprep.subr.mxu0 0.0
    %2164 = vmatpush2.xpose.msra.mxu0 0.0
    %2165 = vmatprep.subr.mxu0 0.0
    %2166 = vmatpush2.xpose.msra.mxu0 0.0
    %2167 = vmatprep.subr.mxu0 0.0
    %2168 = vmatpush2.xpose.msra.mxu0 0.0
    %2169 = vmatprep.subr.mxu0 0.0
    %2170 = vmatpush2.xpose.msra.mxu0 0.0
    %2171 = vmatprep.subr.mxu0 0.0
    %2172 = vmatpush2.xpose.msra.mxu0 0.0
    %2173 = vmatprep.subr.mxu0 0.0
    %2174 = vmatpush2.xpose.msra.mxu0 0.0
    %2175 = vmatprep.mubr.f32.mxu0 %v594
    %2176 = vmatmul.mubr.f32.gmra.mxu0 %v593
    %v2177 = vpop.f32.mrf.mxu0
    %v2178 = vadd.f32 %v2103, %v2177
    %v2179 = vpop.f32.mrf.mxu0
    %2180 = vmatprep.mubr.f32.mxu0 %v610
    %2181 = vmatmul.mubr.f32.gmra.mxu0 %v609
    %v2182 = vpop.f32.mrf.mxu0
    %v2183 = vadd.f32 %v2108, %v2182
    %v2184 = vpop.f32.mrf.mxu0
    %2185 = vdwg.mxu0
    %2186 = vmatprep.subr.mxu0 0.0
    %2187 = vmatpush1.xpose.msra.mxu0 0.0
    %2188 = vmatprep.subr.mxu0 0.0
    %2189 = vmatpush1.xpose.msra.mxu0 0.0
    %2190 = vmatprep.subr.mxu0 0.0
    %2191 = vmatpush1.xpose.msra.mxu0 0.0
    %2192 = vmatprep.subr.mxu0 0.0
    %2193 = vmatpush1.xpose.msra.mxu0 0.0
    %2194 = vmatprep.subr.mxu0 0.0
    %2195 = vmatpush1.xpose.msra.mxu0 0.0
    %2196 = vmatprep.subr.mxu0 0.0
    %2197 = vmatpush1.xpose.msra.mxu0 0.0
    %2198 = vmatprep.subr.mxu0 0.0
    %2199 = vmatpush1.xpose.msra.mxu0 0.0
    %2200 = vmatprep.subr.mxu0 0.0
    %2201 = vmatpush1.xpose.msra.mxu0 0.0
    %2202 = vmatprep.subr.mxu0 0.0
    %2203 = vmatpush1.xpose.msra.mxu0 0.0
    %2204 = vmatprep.subr.mxu0 0.0
    %2205 = vmatpush1.xpose.msra.mxu0 0.0
    %2206 = vmatprep.subr.mxu0 0.0
    %2207 = vmatpush1.xpose.msra.mxu0 0.0
    %2208 = vmatprep.subr.mxu0 0.0
    %2209 = vmatpush1.xpose.msra.mxu0 0.0
    %2210 = vmatprep.subr.mxu0 0.0
    %2211 = vmatpush1.xpose.msra.mxu0 0.0
    %2212 = vmatprep.subr.mxu0 0.0
    %2213 = vmatpush1.xpose.msra.mxu0 0.0
    %2214 = vmatprep.subr.mxu0 %v612
    %2215 = vmatpush1.xpose.msra.mxu0 %v611
    %2216 = vmatprep.subr.mxu0 %v596
    %2217 = vmatpush1.xpose.msra.mxu0 %v595
    %2218 = vmatprep.subr.mxu0 0.0
    %2219 = vmatpush2.xpose.msra.mxu0 0.0
    %2220 = vmatprep.subr.mxu0 0.0
    %2221 = vmatpush2.xpose.msra.mxu0 0.0
    %2222 = vmatprep.subr.mxu0 0.0
    %2223 = vmatpush2.xpose.msra.mxu0 0.0
    %2224 = vmatprep.subr.mxu0 0.0
    %2225 = vmatpush2.xpose.msra.mxu0 0.0
    %2226 = vmatprep.subr.mxu0 0.0
    %2227 = vmatpush2.xpose.msra.mxu0 0.0
    %2228 = vmatprep.subr.mxu0 0.0
    %2229 = vmatpush2.xpose.msra.mxu0 0.0
    %2230 = vmatprep.subr.mxu0 0.0
    %2231 = vmatpush2.xpose.msra.mxu0 0.0
    %2232 = vmatprep.subr.mxu0 0.0
    %2233 = vmatpush2.xpose.msra.mxu0 0.0
    %2234 = vmatprep.subr.mxu0 0.0
    %2235 = vmatpush2.xpose.msra.mxu0 0.0
    %2236 = vmatprep.subr.mxu0 0.0
    %2237 = vmatpush2.xpose.msra.mxu0 0.0
    %2238 = vmatprep.subr.mxu0 0.0
    %2239 = vmatpush2.xpose.msra.mxu0 0.0
    %2240 = vmatprep.subr.mxu0 0.0
    %2241 = vmatpush2.xpose.msra.mxu0 0.0
    %2242 = vmatprep.subr.mxu0 0.0
    %2243 = vmatpush2.xpose.msra.mxu0 0.0
    %2244 = vmatprep.subr.mxu0 0.0
    %2245 = vmatpush2.xpose.msra.mxu0 0.0
    %2246 = vmatprep.subr.mxu0 0.0
    %2247 = vmatpush2.xpose.msra.mxu0 0.0
    %2248 = vmatprep.subr.mxu0 0.0
    %2249 = vmatpush2.xpose.msra.mxu0 0.0
    %2250 = vmatprep.mubr.f32.mxu0 %v596
    %2251 = vmatmul.mubr.f32.gmra.mxu0 %v595
    %v2252 = vpop.f32.mrf.mxu0
    %v2253 = vadd.f32 %v2178, %v2252
    %v2254 = vpop.f32.mrf.mxu0
    %2255 = vmatprep.mubr.f32.mxu0 %v612
    %2256 = vmatmul.mubr.f32.gmra.mxu0 %v611
    %v2257 = vpop.f32.mrf.mxu0
    %v2258 = vadd.f32 %v2183, %v2257
    %v2259 = vpop.f32.mrf.mxu0
    %2260 = vdwg.mxu0
    %vm2261 = vcmask 1040384
    %v2262 = vsel %vm2261, %v186, 0.0
    %v2263 = vsel %vm2261, %v193, 0.0
    %v2264 = vadd.f32 %v2262, %v2263
    %v2265 = vsel %vm2261, %v200, 0.0
    %v2266 = vadd.f32 %v2264, %v2265
    %v2267 = vsel %vm2261, %v207, 0.0
    %v2268 = vadd.f32 %v2266, %v2267
    %v2269 = vsel %vm2261, %v214, 0.0
    %v2270 = vadd.f32 %v2268, %v2269
    %v2271 = vsel %vm2261, %v221, 0.0
    %v2272 = vadd.f32 %v2270, %v2271
    %v2273 = vsel %vm2261, %v228, 0.0
    %v2274 = vadd.f32 %v2272, %v2273
    %v2275 = vsel %vm2261, %v235, 0.0
    %v2276 = vadd.f32 %v2274, %v2275
    %v2277 = vsel %vm2261, %v242, 0.0
    %v2278 = vadd.f32 %v2276, %v2277
    %v2279 = vsel %vm2261, %v249, 0.0
    %v2280 = vadd.f32 %v2278, %v2279
    %v2281 = vsel %vm2261, %v256, 0.0
    %v2282 = vadd.f32 %v2280, %v2281
    %v2283 = vsel %vm2261, %v263, 0.0
    %v2284 = vadd.f32 %v2282, %v2283
    %v2285 = vsel %vm2261, %v270, 0.0
    %v2286 = vadd.f32 %v2284, %v2285
    %v2287 = vsel %vm2261, %v277, 0.0
    %v2288 = vadd.f32 %v2286, %v2287
    %v2289 = vsel %vm2261, %v284, 0.0
    %v2290 = vadd.f32 %v2288, %v2289
    %v2291 = vsel %vm2261, %v291, 0.0
    %v2292 = vadd.f32 %v2290, %v2291
    %2293 = vadd.xlane.f32.xlu0 %v2292
    %v2294 = vpop.xlane.xlu0 %2293
    %v2295 = vrot.slane %v2294, 4
    %v2296 = vadd.f32 %v2294, %v2295
    %v2297 = vrot.slane %v2296, 2
    %v2298 = vadd.f32 %v2296, %v2297
    %v2299 = vrot.slane %v2298, 1
    %v2300 = vadd.f32 %v2298, %v2299
    %s2301 = vtos %v2300
    %v2302 = vsel %vm2261, %v949, 0.0
    %v2303 = vsel %vm2261, %v950, 0.0
    %v2304 = vadd.f32 %v2302, %v2303
    %v2305 = vsel %vm2261, %v951, 0.0
    %v2306 = vadd.f32 %v2304, %v2305
    %v2307 = vsel %vm2261, %v952, 0.0
    %v2308 = vadd.f32 %v2306, %v2307
    %v2309 = vsel %vm2261, %v953, 0.0
    %v2310 = vadd.f32 %v2308, %v2309
    %v2311 = vsel %vm2261, %v954, 0.0
    %v2312 = vadd.f32 %v2310, %v2311
    %v2313 = vsel %vm2261, %v955, 0.0
    %v2314 = vadd.f32 %v2312, %v2313
    %v2315 = vsel %vm2261, %v956, 0.0
    %v2316 = vadd.f32 %v2314, %v2315
    %v2317 = vsel %vm2261, %v957, 0.0
    %v2318 = vadd.f32 %v2316, %v2317
    %v2319 = vsel %vm2261, %v958, 0.0
    %v2320 = vadd.f32 %v2318, %v2319
    %v2321 = vsel %vm2261, %v959, 0.0
    %v2322 = vadd.f32 %v2320, %v2321
    %v2323 = vsel %vm2261, %v960, 0.0
    %v2324 = vadd.f32 %v2322, %v2323
    %v2325 = vsel %vm2261, %v961, 0.0
    %v2326 = vadd.f32 %v2324, %v2325
    %v2327 = vsel %vm2261, %v962, 0.0
    %v2328 = vadd.f32 %v2326, %v2327
    %v2329 = vsel %vm2261, %v963, 0.0
    %v2330 = vadd.f32 %v2328, %v2329
    %v2331 = vsel %vm2261, %v964, 0.0
    %v2332 = vadd.f32 %v2330, %v2331
    %2333 = vadd.xlane.f32.xlu0 %v2332
    %v2334 = vpop.xlane.xlu0 %2333
    %v2335 = vrot.slane %v2334, 4
    %v2336 = vadd.f32 %v2334, %v2335
    %v2337 = vrot.slane %v2336, 2
    %v2338 = vadd.f32 %v2336, %v2337
    %v2339 = vrot.slane %v2338, 1
    %v2340 = vadd.f32 %v2338, %v2339
    %s2341 = vtos %v2340
    %v2342 = vsel %vm2261, %v1013, 0.0
    %v2343 = vsel %vm2261, %v1014, 0.0
    %v2344 = vadd.f32 %v2342, %v2343
    %v2345 = vsel %vm2261, %v1015, 0.0
    %v2346 = vadd.f32 %v2344, %v2345
    %v2347 = vsel %vm2261, %v1016, 0.0
    %v2348 = vadd.f32 %v2346, %v2347
    %v2349 = vsel %vm2261, %v1017, 0.0
    %v2350 = vadd.f32 %v2348, %v2349
    %v2351 = vsel %vm2261, %v1018, 0.0
    %v2352 = vadd.f32 %v2350, %v2351
    %v2353 = vsel %vm2261, %v1019, 0.0
    %v2354 = vadd.f32 %v2352, %v2353
    %v2355 = vsel %vm2261, %v1020, 0.0
    %v2356 = vadd.f32 %v2354, %v2355
    %v2357 = vsel %vm2261, %v1021, 0.0
    %v2358 = vadd.f32 %v2356, %v2357
    %v2359 = vsel %vm2261, %v1022, 0.0
    %v2360 = vadd.f32 %v2358, %v2359
    %v2361 = vsel %vm2261, %v1023, 0.0
    %v2362 = vadd.f32 %v2360, %v2361
    %v2363 = vsel %vm2261, %v1024, 0.0
    %v2364 = vadd.f32 %v2362, %v2363
    %v2365 = vsel %vm2261, %v1025, 0.0
    %v2366 = vadd.f32 %v2364, %v2365
    %v2367 = vsel %vm2261, %v1026, 0.0
    %v2368 = vadd.f32 %v2366, %v2367
    %v2369 = vsel %vm2261, %v1027, 0.0
    %v2370 = vadd.f32 %v2368, %v2369
    %v2371 = vsel %vm2261, %v1028, 0.0
    %v2372 = vadd.f32 %v2370, %v2371
    %2373 = vadd.xlane.f32.xlu0 %v2372
    %v2374 = vpop.xlane.xlu0 %2373
    %v2375 = vrot.slane %v2374, 4
    %v2376 = vadd.f32 %v2374, %v2375
    %v2377 = vrot.slane %v2376, 2
    %v2378 = vadd.f32 %v2376, %v2377
    %v2379 = vrot.slane %v2378, 1
    %v2380 = vadd.f32 %v2378, %v2379
    %s2381 = vtos %v2380
    %v2382 = vsel %vm2261, %v1029, 0.0
    %v2383 = vsel %vm2261, %v1030, 0.0
    %v2384 = vadd.f32 %v2382, %v2383
    %v2385 = vsel %vm2261, %v1031, 0.0
    %v2386 = vadd.f32 %v2384, %v2385
    %v2387 = vsel %vm2261, %v1032, 0.0
    %v2388 = vadd.f32 %v2386, %v2387
    %v2389 = vsel %vm2261, %v1033, 0.0
    %v2390 = vadd.f32 %v2388, %v2389
    %v2391 = vsel %vm2261, %v1034, 0.0
    %v2392 = vadd.f32 %v2390, %v2391
    %v2393 = vsel %vm2261, %v1035, 0.0
    %v2394 = vadd.f32 %v2392, %v2393
    %v2395 = vsel %vm2261, %v1036, 0.0
    %v2396 = vadd.f32 %v2394, %v2395
    %v2397 = vsel %vm2261, %v1037, 0.0
    %v2398 = vadd.f32 %v2396, %v2397
    %v2399 = vsel %vm2261, %v1038, 0.0
    %v2400 = vadd.f32 %v2398, %v2399
    %v2401 = vsel %vm2261, %v1039, 0.0
    %v2402 = vadd.f32 %v2400, %v2401
    %v2403 = vsel %vm2261, %v1040, 0.0
    %v2404 = vadd.f32 %v2402, %v2403
    %v2405 = vsel %vm2261, %v1041, 0.0
    %v2406 = vadd.f32 %v2404, %v2405
    %v2407 = vsel %vm2261, %v1042, 0.0
    %v2408 = vadd.f32 %v2406, %v2407
    %v2409 = vsel %vm2261, %v1043, 0.0
    %v2410 = vadd.f32 %v2408, %v2409
    %v2411 = vsel %vm2261, %v1044, 0.0
    %v2412 = vadd.f32 %v2410, %v2411
    %2413 = vadd.xlane.f32.xlu0 %v2412
    %v2414 = vpop.xlane.xlu0 %2413
    %v2415 = vrot.slane %v2414, 4
    %v2416 = vadd.f32 %v2414, %v2415
    %v2417 = vrot.slane %v2416, 2
    %v2418 = vadd.f32 %v2416, %v2417
    %v2419 = vrot.slane %v2418, 1
    %v2420 = vadd.f32 %v2418, %v2419
    %s2421 = vtos %v2420
    %v2422 = vsel %vm2261, %v1045, 0.0
    %v2423 = vsel %vm2261, %v1046, 0.0
    %v2424 = vadd.f32 %v2422, %v2423
    %v2425 = vsel %vm2261, %v1047, 0.0
    %v2426 = vadd.f32 %v2424, %v2425
    %v2427 = vsel %vm2261, %v1048, 0.0
    %v2428 = vadd.f32 %v2426, %v2427
    %v2429 = vsel %vm2261, %v1049, 0.0
    %v2430 = vadd.f32 %v2428, %v2429
    %v2431 = vsel %vm2261, %v1050, 0.0
    %v2432 = vadd.f32 %v2430, %v2431
    %v2433 = vsel %vm2261, %v1051, 0.0
    %v2434 = vadd.f32 %v2432, %v2433
    %v2435 = vsel %vm2261, %v1052, 0.0
    %v2436 = vadd.f32 %v2434, %v2435
    %v2437 = vsel %vm2261, %v1053, 0.0
    %v2438 = vadd.f32 %v2436, %v2437
    %v2439 = vsel %vm2261, %v1054, 0.0
    %v2440 = vadd.f32 %v2438, %v2439
    %v2441 = vsel %vm2261, %v1055, 0.0
    %v2442 = vadd.f32 %v2440, %v2441
    %v2443 = vsel %vm2261, %v1056, 0.0
    %v2444 = vadd.f32 %v2442, %v2443
    %v2445 = vsel %vm2261, %v1057, 0.0
    %v2446 = vadd.f32 %v2444, %v2445
    %v2447 = vsel %vm2261, %v1058, 0.0
    %v2448 = vadd.f32 %v2446, %v2447
    %v2449 = vsel %vm2261, %v1059, 0.0
    %v2450 = vadd.f32 %v2448, %v2449
    %v2451 = vsel %vm2261, %v1060, 0.0
    %v2452 = vadd.f32 %v2450, %v2451
    %2453 = vadd.xlane.f32.xlu0 %v2452
    %v2454 = vpop.xlane.xlu0 %2453
    %v2455 = vrot.slane %v2454, 4
    %v2456 = vadd.f32 %v2454, %v2455
    %v2457 = vrot.slane %v2456, 2
    %v2458 = vadd.f32 %v2456, %v2457
    %v2459 = vrot.slane %v2458, 1
    %v2460 = vadd.f32 %v2458, %v2459
    %s2461 = vtos %v2460
    %v2462 = vmul.f32 %v1653, %v1653
    %v2463 = vmul.f32 %v1658, %v1658
    %vm2464 = vcmask 130048
    %v2465 = vsel %vm2464, %v2462, 0.0
    %v2466 = vsel %vm2464, %v2463, 0.0
    %v2467 = vadd.f32 %v2465, %v2466
    %2468 = vadd.xlane.f32.xlu0 %v2467
    %v2469 = vpop.xlane.xlu0 %2468
    %v2470 = vrot.slane %v2469, 4
    %v2471 = vadd.f32 %v2469, %v2470
    %v2472 = vrot.slane %v2471, 2
    %v2473 = vadd.f32 %v2471, %v2472
    %v2474 = vrot.slane %v2473, 1
    %v2475 = vadd.f32 %v2473, %v2474
    %s2476 = vtos %v2475
    %v2477 = vmul.f32 %v2253, %v2253
    %v2478 = vmul.f32 %v2258, %v2258
    %v2479 = vsel %vm2464, %v2477, 0.0
    %v2480 = vsel %vm2464, %v2478, 0.0
    %v2481 = vadd.f32 %v2479, %v2480
    %2482 = vadd.xlane.f32.xlu0 %v2481
    %v2483 = vpop.xlane.xlu0 %2482
    %v2484 = vrot.slane %v2483, 4
    %v2485 = vadd.f32 %v2483, %v2484
    %v2486 = vrot.slane %v2485, 2
    %v2487 = vadd.f32 %v2485, %v2486
    %v2488 = vrot.slane %v2487, 1
    %v2489 = vadd.f32 %v2487, %v2488
    %s2490 = vtos %v2489
    %s2491 = scalar_lea.smem [#allocation7], 0
    %2492 = sst [smem:[%s2491]] %s2301
    %s2493 = scalar_lea.smem [#allocation7], 1
    %2494 = sst [smem:[%s2493]] %s2341
    %s2495 = scalar_lea.smem [#allocation7], 2
    %2496 = sst [smem:[%s2495]] %s2381
    %s2497 = scalar_lea.smem [#allocation7], 3
    %2498 = sst [smem:[%s2497]] %s2421
    %s2499 = scalar_lea.smem [#allocation7], 4
    %2500 = sst [smem:[%s2499]] %s2461
    %s2501 = scalar_lea.smem [#allocation7], 5
    %2502 = sst [smem:[%s2501]] %s2476
    %s2503 = scalar_lea.smem [#allocation7], 6
    %2504 = sst [smem:[%s2503]] %s2490
    %s2505 = scalar_lea.smem [#allocation7], 7
    %2506 = sst [smem:[%s2505]] 0.0
    // Predicated region
    $region18: #{tpu_custom_call.1} parent=1 // pred_check
      _
    $region19: #{tpu_custom_call.1} parent=1 // pred_check_branch
      %2508 = sbr.rel (0) target = $region21
    $region20: #{tpu_custom_call.1} parent=1 // pred_region
      %s2510 = ssub.s32 16, 16
      %2511 = vsyncadd [#allocation4], %s2510
      %2514 = dma.smem_to_hbm [#allocation7], 16, %s2, [#allocation4]
    $region21: #{tpu_custom_call.1} parent=1 // pred_fallthru
      _
    // Predicated region
    $region22: #{tpu_custom_call.1} parent=1 // pred_check
      _
    $region23: #{tpu_custom_call.1} parent=1 // pred_check_branch
      %2516 = sbr.rel (0) target = $region25
    $region24: #{tpu_custom_call.1} parent=1 // pred_region
      %2517 = dma.done [#allocation4], 16
    $region25: #{tpu_custom_call.1} parent=1 // pred_fallthru
      _
    %2518 = sfence
    %2519 = vsyncpa [#allocation3], 1
    %2520 = vsyncpa [#allocation6], 1
    %2521 = vsyncpa [#allocation4], 1

</llo_original>
